<compile_context>
chip_gen: v5e
topology: v5e:2x2
jax: 0.10.0
libtpu: 0.0.40
codegen_flags: <defaults>
</compile_context>

<pallas_src>
import numpy as np
import jax
import jax.numpy as jnp
from jax import lax
from jax.experimental import pallas as pl
from jax.experimental.pallas import tpu as pltpu

# Small synthetic dims (hidden_size stands in for config.hidden_size)
B, S, H, V = 2, 8, 32, 64
NH = 4
HD = H // NH
FF = 4 * H
EPS = 1e-12

VP = 128   # vocab head padded to a lane-dense 128-wide slab (sliced to V outside)
CP = 128   # copy head padded to a lane-dense 128-wide slab (sliced to 3 outside)


def _gelu(x):
    # tanh-approx GELU (EUP tanh). PyTorch nn.GELU() default is the exact erf
    # form; difference <1e-3 and both kernel and reference use the same approx.
    c = 0.7978845608028654  # sqrt(2/pi)
    return 0.5 * x * (1.0 + jnp.tanh(c * (x + 0.044715 * x * x * x)))


def _layer_norm(x, gamma, beta):
    mu = jnp.mean(x, axis=-1, keepdims=True)
    var = jnp.mean((x - mu) ** 2, axis=-1, keepdims=True)
    return (x - mu) * lax.rsqrt(var + EPS) * gamma + beta


def seq2seq_head_kernel(x_ref,
                        wqkv_ref, bqkv_ref, wo_ref, bo_ref,
                        g1_ref, be1_ref, w1_ref, b1_ref, w2_ref, b2_ref,
                        g2_ref, be2_ref, wvoc_ref, bvoc_ref, wcpy_ref, bcpy_ref,
                        seq_out_ref, cpy_out_ref):
    # x_ref block is (chunk_B * S, H): the (sub-)batch row-stacked so every
    # dense matmul feeds chunk_B*S rows to the MXU instead of S.
    n = x_ref.shape[0]
    cb = n // S
    x = x_ref[...]                        # (n, H) f32
    xb = x.astype(jnp.bfloat16)

    # Fused QKV projection: one (n, H) x (H, 3H) bf16 MXU matmul, f32 acc.
    qkv = jnp.dot(xb, wqkv_ref[...], preferred_element_type=jnp.float32) + bqkv_ref[...]
    q = qkv[:, :H].astype(jnp.bfloat16)
    k = qkv[:, H:2 * H].astype(jnp.bfloat16)
    v = qkv[:, 2 * H:].astype(jnp.bfloat16)

    wo = wo_ref[...]                      # (H, H) bf16, loaded once (hoisted)
    scale = 1.0 / float(np.sqrt(HD))
    dn = (((1,), (1,)), ((), ()))         # contract last dims: qh . kh^T, no transpose

    # TODO(synk): real NEZHA/UniLM seq2seq applies a causal/segment attention
    # mask here; omitted for the synthetic stand-in (matches the reference).
    attn_rows = []
    for b in range(cb):                   # static loop over batch rows in this block
        r0 = b * S
        acc = None
        for h in range(NH):               # static loop over heads
            c0 = h * HD
            qh = q[r0:r0 + S, c0:c0 + HD]
            kh = k[r0:r0 + S, c0:c0 + HD]
            vh = v[r0:r0 + S, c0:c0 + HD]
            s = lax.dot_general(qh, kh, dn, preferred_element_type=jnp.float32) * scale
            s = s - jnp.max(s, axis=-1, keepdims=True)
            p = jnp.exp(s)
            p = p * pl.reciprocal(jnp.sum(p, axis=-1, keepdims=True), approx=True)
            ctx_h = jnp.dot(p.astype(jnp.bfloat16), vh,
                            preferred_element_type=jnp.float32)
            # Fold the output projection into per-head MXU accumulation instead
            # of a lane-dim concat followed by one big matmul.
            contrib = jnp.dot(ctx_h.astype(jnp.bfloat16), wo[c0:c0 + HD, :],
                              preferred_element_type=jnp.float32)
            acc = contrib if acc is None else acc + contrib
        attn_rows.append(acc)
    attn = attn_rows[0] if cb == 1 else jnp.concatenate(attn_rows, axis=0)
    attn = attn + bo_ref[...]

    h1 = _layer_norm(x + attn, g1_ref[...], be1_ref[...])

    ff = _gelu(jnp.dot(h1.astype(jnp.bfloat16), w1_ref[...],
                       preferred_element_type=jnp.float32) + b1_ref[...])
    ff = jnp.dot(ff.astype(jnp.bfloat16), w2_ref[...],
                 preferred_element_type=jnp.float32) + b2_ref[...]
    hidden = _layer_norm(h1 + ff, g2_ref[...], be2_ref[...])

    # Both heads write lane-dense 128-wide slabs (unmasked vst).
    hb = hidden.astype(jnp.bfloat16)
    seq_out_ref[...] = (jnp.dot(hb, wvoc_ref[...],
                                preferred_element_type=jnp.float32) + bvoc_ref[...])
    cpy_out_ref[...] = (jnp.dot(_gelu(hidden).astype(jnp.bfloat16), wcpy_ref[...],
                                preferred_element_type=jnp.float32) + bcpy_ref[...])


def _full_spec(shape):
    nd = len(shape)
    return pl.BlockSpec(shape, lambda b, _nd=nd: (0,) * _nd)


def _num_batch_blocks():
    # v7x has 2 TensorCores/chip: keep a parallel batch axis so both are used.
    # v5e/v6e have 1 TC: collapse to a single grid step (per-step pipeline
    # overhead ~0.35us would rival the whole compute at this size).
    try:
        kind = jax.devices()[0].device_kind.lower()
    except Exception:
        kind = ""
    if ("v7" in kind or "7x" in kind) and B % 2 == 0:
        return 2
    return 1


def _pack_kernel_params(p):
    bf = jnp.bfloat16
    wqkv = jnp.concatenate([p["wq"], p["wk"], p["wv"]], axis=1).astype(bf)   # (H, 3H)
    bqkv = jnp.concatenate([p["bq"], p["bk"], p["bv"]], axis=1)              # (1, 3H) f32
    wvoc = jnp.zeros((H, VP), jnp.float32).at[:, :V].set(p["wvoc"]).astype(bf)
    bvoc = jnp.zeros((1, VP), jnp.float32).at[:, :V].set(p["bvoc"])
    wcpy = jnp.zeros((H, CP), jnp.float32).at[:, :3].set(p["wcpy"]).astype(bf)
    bcpy = jnp.zeros((1, CP), jnp.float32).at[:, :3].set(p["bcpy"])
    return [wqkv, bqkv,
            p["wo"].astype(bf), p["bo"], p["g1"], p["be1"],
            p["w1"].astype(bf), p["b1"], p["w2"].astype(bf), p["b2"],
            p["g2"], p["be2"], wvoc, bvoc, wcpy, bcpy]


def generate_model_forward(token_ids, token_type_ids, params):
    # --- glue: embedding gather + embedding LayerNorm (not the hot path) ---
    x = (params["word_emb"][token_ids]
         + params["pos_emb"][None, :, :]
         + params["type_emb"][token_type_ids])
    x = _layer_norm(x, params["emb_g"], params["emb_b"])        # (B, S, H) f32
    x2 = x.reshape(B * S, H)                                    # row-stacked batch

    kparams = _pack_kernel_params(params)
    nblk = _num_batch_blocks()
    rows = (B * S) // nblk

    in_specs = [pl.BlockSpec((rows, H), lambda b: (b, 0))]
    in_specs += [_full_spec(tuple(p.shape)) for p in kparams]
    out_shapes = (
        jax.ShapeDtypeStruct((B * S, VP), jnp.float32),
        jax.ShapeDtypeStruct((B * S, CP), jnp.float32),
    )
    out_specs = (
        pl.BlockSpec((rows, VP), lambda b: (b, 0)),
        pl.BlockSpec((rows, CP), lambda b: (b, 0)),
    )

    # TODO(synk): at real NEZHA dims (H=768, V~21k) the vocab weight must be
    # grid-tiled along V (blocks of (H, 256*k)) to fit v7x's 64 MiB VMEM.
    seq_flat, cpy_flat = pl.pallas_call(
        seq2seq_head_kernel,
        out_shape=out_shapes,
        grid=(nblk,),
        in_specs=in_specs,
        out_specs=out_specs,
        compiler_params=pltpu.CompilerParams(
            dimension_semantics=("parallel",)),
    )(x2, *kparams)

    seq_pred = seq_flat.reshape(B, S, VP)[..., :V]
    cpy_pred = cpy_flat.reshape(B, S, CP)[..., :3]
    return seq_pred, cpy_pred


def init_params(key):
    keys = iter(jax.random.split(key, 16))

    def nrm(shape, scale=0.02):
        return scale * jax.random.normal(next(keys), shape, dtype=jnp.float32)

    ones = lambda s: jnp.ones(s, jnp.float32)
    zeros = lambda s: jnp.zeros(s, jnp.float32)
    return {
        "word_emb": nrm((V, H)),
        "pos_emb": nrm((S, H)),
        "type_emb": nrm((2, H)),
        "emb_g": ones((1, H)), "emb_b": zeros((1, H)),
        "wq": nrm((H, H)), "bq": zeros((1, H)),
        "wk": nrm((H, H)), "bk": zeros((1, H)),
        "wv": nrm((H, H)), "bv": zeros((1, H)),
        "wo": nrm((H, H)), "bo": zeros((1, H)),
        "g1": ones((1, H)), "be1": zeros((1, H)),
        "w1": nrm((H, FF)), "b1": zeros((1, FF)),
        "w2": nrm((FF, H)), "b2": zeros((1, H)),
        "g2": ones((1, H)), "be2": zeros((1, H)),
        "wvoc": nrm((H, V)), "bvoc": zeros((1, V)),
        "wcpy": nrm((H, 3)), "bcpy": zeros((1, 3)),
    }


def _mm(a, b):
    # Reference matmul mirroring the kernel: bf16 operands, f32 accumulation.
    return jnp.dot(a.astype(jnp.bfloat16), b.astype(jnp.bfloat16),
                   preferred_element_type=jnp.float32)


def reference_forward(token_ids, token_type_ids, params):
    # pure-JAX reference mirroring the kernel math (bf16 matmuls, f32 norms)
    x = (params["word_emb"][token_ids]
         + params["pos_emb"][None, :, :]
         + params["type_emb"][token_type_ids])
    x = _layer_norm(x, params["emb_g"], params["emb_b"])

    def one(xb):
        q = _mm(xb, params["wq"]) + params["bq"]
        k = _mm(xb, params["wk"]) + params["bk"]
        v = _mm(xb, params["wv"]) + params["bv"]
        scale = 1.0 / float(np.sqrt(HD))
        ctx = []
        for h in range(NH):
            qh, kh, vh = (t[:, h * HD:(h + 1) * HD] for t in (q, k, v))
            p = jax.nn.softmax(_mm(qh, kh.T) * scale, axis=-1)
            ctx.append(_mm(p, vh))
        ctx = jnp.concatenate(ctx, axis=-1)
        attn = _mm(ctx, params["wo"]) + params["bo"]
        h1 = _layer_norm(xb + attn, params["g1"], params["be1"])
        ff = _gelu(_mm(h1, params["w1"]) + params["b1"])
        ff = _mm(ff, params["w2"]) + params["b2"]
        hidden = _layer_norm(h1 + ff, params["g2"], params["be2"])
        seq = _mm(hidden, params["wvoc"]) + params["bvoc"]
        cpy = _mm(_gelu(hidden), params["wcpy"]) + params["bcpy"]
        return seq, cpy

    return jax.vmap(one)(x)


if __name__ == "__main__":
    key = jax.random.PRNGKey(0)
    pkey, ikey, tkey = jax.random.split(key, 3)
    params = init_params(pkey)

    # TODO(synk): real BertTokenizer / vocab loading has no Pallas equivalent;
    # synthetic token ids are used instead.
    token_ids = jax.random.randint(ikey, (B, S), 0, V, dtype=jnp.int32)
    token_type_ids = jax.random.randint(tkey, (B, S), 0, 2, dtype=jnp.int32)

    seq_pred, cpy_pred = generate_model_forward(token_ids, token_type_ids, params)
    jax.block_until_ready((seq_pred, cpy_pred))

    ref_seq, ref_cpy = reference_forward(token_ids, token_type_ids, params)
    assert seq_pred.shape == (B, S, V) and cpy_pred.shape == (B, S, 3)
    np.testing.assert_allclose(np.asarray(seq_pred), np.asarray(ref_seq),
                               atol=5e-2, rtol=5e-2)
    np.testing.assert_allclose(np.asarray(cpy_pred), np.asarray(ref_cpy),
                               atol=5e-2, rtol=5e-2)
    print("KERNEL_OK")
</pallas_src>

<mosaic_0001>
module attributes {stable_mosaic.version = 11 : i64} {
  func.func @seq2seq_head_kernel(%arg0: i32, %arg1: memref<16x32xf32, #tpu.memory_space<vmem>>, %arg2: memref<32x96xbf16, #tpu.memory_space<vmem>>, %arg3: memref<1x96xf32, #tpu.memory_space<vmem>>, %arg4: memref<32x32xbf16, #tpu.memory_space<vmem>>, %arg5: memref<1x32xf32, #tpu.memory_space<vmem>>, %arg6: memref<1x32xf32, #tpu.memory_space<vmem>>, %arg7: memref<1x32xf32, #tpu.memory_space<vmem>>, %arg8: memref<32x128xbf16, #tpu.memory_space<vmem>>, %arg9: memref<1x128xf32, #tpu.memory_space<vmem>>, %arg10: memref<128x32xbf16, #tpu.memory_space<vmem>>, %arg11: memref<1x32xf32, #tpu.memory_space<vmem>>, %arg12: memref<1x32xf32, #tpu.memory_space<vmem>>, %arg13: memref<1x32xf32, #tpu.memory_space<vmem>>, %arg14: memref<32x128xbf16, #tpu.memory_space<vmem>>, %arg15: memref<1x128xf32, #tpu.memory_space<vmem>>, %arg16: memref<32x128xbf16, #tpu.memory_space<vmem>>, %arg17: memref<1x128xf32, #tpu.memory_space<vmem>>, %arg18: memref<16x128xf32, #tpu.memory_space<vmem>>, %arg19: memref<16x128xf32, #tpu.memory_space<vmem>>) attributes {dimension_semantics = [#tpu.dimension_semantics<parallel>], iteration_bounds = array<i64: 1>, scalar_prefetch = 0 : i64, scratch_operands = 0 : i64, tpu.core_type = #tpu.core_type<tc>, window_params = [{transform_indices = @transform_0, window_bounds = array<i64: 16, 32>}, {pipeline_mode = #tpu.pipeline_mode<synchronous>, transform_indices = @transform_1, window_bounds = array<i64: 32, 96>}, {pipeline_mode = #tpu.pipeline_mode<synchronous>, transform_indices = @transform_2, window_bounds = array<i64: 1, 96>}, {pipeline_mode = #tpu.pipeline_mode<synchronous>, transform_indices = @transform_3, window_bounds = array<i64: 32, 32>}, {pipeline_mode = #tpu.pipeline_mode<synchronous>, transform_indices = @transform_4, window_bounds = array<i64: 1, 32>}, {pipeline_mode = #tpu.pipeline_mode<synchronous>, transform_indices = @transform_5, window_bounds = array<i64: 1, 32>}, {pipeline_mode = #tpu.pipeline_mode<synchronous>, transform_indices = @transform_6, window_bounds = array<i64: 1, 32>}, {pipeline_mode = #tpu.pipeline_mode<synchronous>, transform_indices = @transform_7, window_bounds = array<i64: 32, 128>}, {pipeline_mode = #tpu.pipeline_mode<synchronous>, transform_indices = @transform_8, window_bounds = array<i64: 1, 128>}, {pipeline_mode = #tpu.pipeline_mode<synchronous>, transform_indices = @transform_9, window_bounds = array<i64: 128, 32>}, {pipeline_mode = #tpu.pipeline_mode<synchronous>, transform_indices = @transform_10, window_bounds = array<i64: 1, 32>}, {pipeline_mode = #tpu.pipeline_mode<synchronous>, transform_indices = @transform_11, window_bounds = array<i64: 1, 32>}, {pipeline_mode = #tpu.pipeline_mode<synchronous>, transform_indices = @transform_12, window_bounds = array<i64: 1, 32>}, {pipeline_mode = #tpu.pipeline_mode<synchronous>, transform_indices = @transform_13, window_bounds = array<i64: 32, 128>}, {pipeline_mode = #tpu.pipeline_mode<synchronous>, transform_indices = @transform_14, window_bounds = array<i64: 1, 128>}, {pipeline_mode = #tpu.pipeline_mode<synchronous>, transform_indices = @transform_15, window_bounds = array<i64: 32, 128>}, {pipeline_mode = #tpu.pipeline_mode<synchronous>, transform_indices = @transform_16, window_bounds = array<i64: 1, 128>}, {transform_indices = @transform_17, window_bounds = array<i64: 16, 128>}, {transform_indices = @transform_18, window_bounds = array<i64: 16, 128>}]} {
    %c0 = arith.constant 0 : index
    %c0_0 = arith.constant 0 : index
    %0 = vector.load %arg1[%c0, %c0_0] : memref<16x32xf32, #tpu.memory_space<vmem>>, vector<16x32xf32>
    %1 = arith.truncf %0 : vector<16x32xf32> to vector<16x32xbf16>
    %c0_1 = arith.constant 0 : index
    %c0_2 = arith.constant 0 : index
    %2 = vector.load %arg2[%c0_1, %c0_2] : memref<32x96xbf16, #tpu.memory_space<vmem>>, vector<32x96xbf16>
    %cst = arith.constant dense<0.000000e+00> : vector<16x96xf32>
    %3 = tpu.matmul %1, %2, %cst {dimension_numbers = #tpu.dot_dimension_numbers<[1], [0], [0], [1], [0, 0, 1, 1], [], []>} : vector<16x32xbf16>, vector<32x96xbf16>, vector<16x96xf32> -> vector<16x96xf32>
    %c0_3 = arith.constant 0 : index
    %c0_4 = arith.constant 0 : index
    %4 = vector.load %arg3[%c0_3, %c0_4] : memref<1x96xf32, #tpu.memory_space<vmem>>, vector<1x96xf32>
    %5 = vector.broadcast %4 : vector<1x96xf32> to vector<16x96xf32>
    %6 = arith.addf %3, %5 : vector<16x96xf32>
    %7 = vector.extract_strided_slice %6 {offsets = [0, 0], sizes = [16, 32], strides = [1, 1]} : vector<16x96xf32> to vector<16x32xf32>
    %8 = arith.truncf %7 : vector<16x32xf32> to vector<16x32xbf16>
    %9 = vector.extract_strided_slice %6 {offsets = [0, 32], sizes = [16, 32], strides = [1, 1]} : vector<16x96xf32> to vector<16x32xf32>
    %10 = arith.truncf %9 : vector<16x32xf32> to vector<16x32xbf16>
    %11 = vector.extract_strided_slice %6 {offsets = [0, 64], sizes = [16, 32], strides = [1, 1]} : vector<16x96xf32> to vector<16x32xf32>
    %12 = arith.truncf %11 : vector<16x32xf32> to vector<16x32xbf16>
    %c0_5 = arith.constant 0 : index
    %c0_6 = arith.constant 0 : index
    %13 = vector.load %arg4[%c0_5, %c0_6] : memref<32x32xbf16, #tpu.memory_space<vmem>>, vector<32x32xbf16>
    %14 = vector.extract_strided_slice %8 {offsets = [0, 0], sizes = [8, 8], strides = [1, 1]} : vector<16x32xbf16> to vector<8x8xbf16>
    %15 = vector.extract_strided_slice %10 {offsets = [0, 0], sizes = [8, 8], strides = [1, 1]} : vector<16x32xbf16> to vector<8x8xbf16>
    %16 = vector.extract_strided_slice %12 {offsets = [0, 0], sizes = [8, 8], strides = [1, 1]} : vector<16x32xbf16> to vector<8x8xbf16>
    %cst_7 = arith.constant dense<0.000000e+00> : vector<8x8xf32>
    %17 = tpu.matmul %14, %15, %cst_7 {dimension_numbers = #tpu.dot_dimension_numbers<[1], [1], [0], [0], [0, 0, 1, 0], [], []>} : vector<8x8xbf16>, vector<8x8xbf16>, vector<8x8xf32> -> vector<8x8xf32>
    %cst_8 = arith.constant 0.353553385 : f32
    %18 = vector.broadcast %cst_8 : f32 to vector<8x8xf32>
    %19 = arith.mulf %17, %18 : vector<8x8xf32>
    %cst_9 = arith.constant dense<0xFF800000> : vector<8xf32>
    %20 = vector.multi_reduction <maximumf>, %19, %cst_9 [1] : vector<8x8xf32> to vector<8xf32>
    %21 = vector.shape_cast %20 : vector<8xf32> to vector<8x1xf32>
    %22 = vector.broadcast %21 : vector<8x1xf32> to vector<8x8xf32>
    %23 = arith.subf %19, %22 : vector<8x8xf32>
    %24 = math.exp %23 : vector<8x8xf32>
    %cst_10 = arith.constant dense<0.000000e+00> : vector<8xf32>
    %25 = vector.multi_reduction <add>, %24, %cst_10 [1] : vector<8x8xf32> to vector<8xf32>
    %26 = vector.shape_cast %25 : vector<8xf32> to vector<8x1xf32>
    %27 = tpu.reciprocal %26 {approx = true} : vector<8x1xf32> -> vector<8x1xf32>
    %28 = vector.broadcast %27 : vector<8x1xf32> to vector<8x8xf32>
    %29 = arith.mulf %24, %28 : vector<8x8xf32>
    %30 = arith.truncf %29 : vector<8x8xf32> to vector<8x8xbf16>
    %cst_11 = arith.constant dense<0.000000e+00> : vector<8x8xf32>
    %31 = tpu.matmul %30, %16, %cst_11 {dimension_numbers = #tpu.dot_dimension_numbers<[1], [0], [0], [1], [0, 0, 1, 1], [], []>} : vector<8x8xbf16>, vector<8x8xbf16>, vector<8x8xf32> -> vector<8x8xf32>
    %32 = arith.truncf %31 : vector<8x8xf32> to vector<8x8xbf16>
    %33 = vector.extract_strided_slice %13 {offsets = [0, 0], sizes = [8, 32], strides = [1, 1]} : vector<32x32xbf16> to vector<8x32xbf16>
    %cst_12 = arith.constant dense<0.000000e+00> : vector<8x32xf32>
    %34 = tpu.matmul %32, %33, %cst_12 {dimension_numbers = #tpu.dot_dimension_numbers<[1], [0], [0], [1], [0, 0, 1, 1], [], []>} : vector<8x8xbf16>, vector<8x32xbf16>, vector<8x32xf32> -> vector<8x32xf32>
    %35 = vector.extract_strided_slice %8 {offsets = [0, 8], sizes = [8, 8], strides = [1, 1]} : vector<16x32xbf16> to vector<8x8xbf16>
    %36 = vector.extract_strided_slice %10 {offsets = [0, 8], sizes = [8, 8], strides = [1, 1]} : vector<16x32xbf16> to vector<8x8xbf16>
    %37 = vector.extract_strided_slice %12 {offsets = [0, 8], sizes = [8, 8], strides = [1, 1]} : vector<16x32xbf16> to vector<8x8xbf16>
    %cst_13 = arith.constant dense<0.000000e+00> : vector<8x8xf32>
    %38 = tpu.matmul %35, %36, %cst_13 {dimension_numbers = #tpu.dot_dimension_numbers<[1], [1], [0], [0], [0, 0, 1, 0], [], []>} : vector<8x8xbf16>, vector<8x8xbf16>, vector<8x8xf32> -> vector<8x8xf32>
    %cst_14 = arith.constant 0.353553385 : f32
    %39 = vector.broadcast %cst_14 : f32 to vector<8x8xf32>
    %40 = arith.mulf %38, %39 : vector<8x8xf32>
    %cst_15 = arith.constant dense<0xFF800000> : vector<8xf32>
    %41 = vector.multi_reduction <maximumf>, %40, %cst_15 [1] : vector<8x8xf32> to vector<8xf32>
    %42 = vector.shape_cast %41 : vector<8xf32> to vector<8x1xf32>
    %43 = vector.broadcast %42 : vector<8x1xf32> to vector<8x8xf32>
    %44 = arith.subf %40, %43 : vector<8x8xf32>
    %45 = math.exp %44 : vector<8x8xf32>
    %cst_16 = arith.constant dense<0.000000e+00> : vector<8xf32>
    %46 = vector.multi_reduction <add>, %45, %cst_16 [1] : vector<8x8xf32> to vector<8xf32>
    %47 = vector.shape_cast %46 : vector<8xf32> to vector<8x1xf32>
    %48 = tpu.reciprocal %47 {approx = true} : vector<8x1xf32> -> vector<8x1xf32>
    %49 = vector.broadcast %48 : vector<8x1xf32> to vector<8x8xf32>
    %50 = arith.mulf %45, %49 : vector<8x8xf32>
    %51 = arith.truncf %50 : vector<8x8xf32> to vector<8x8xbf16>
    %cst_17 = arith.constant dense<0.000000e+00> : vector<8x8xf32>
    %52 = tpu.matmul %51, %37, %cst_17 {dimension_numbers = #tpu.dot_dimension_numbers<[1], [0], [0], [1], [0, 0, 1, 1], [], []>} : vector<8x8xbf16>, vector<8x8xbf16>, vector<8x8xf32> -> vector<8x8xf32>
    %53 = arith.truncf %52 : vector<8x8xf32> to vector<8x8xbf16>
    %54 = vector.extract_strided_slice %13 {offsets = [8, 0], sizes = [8, 32], strides = [1, 1]} : vector<32x32xbf16> to vector<8x32xbf16>
    %cst_18 = arith.constant dense<0.000000e+00> : vector<8x32xf32>
    %55 = tpu.matmul %53, %54, %cst_18 {dimension_numbers = #tpu.dot_dimension_numbers<[1], [0], [0], [1], [0, 0, 1, 1], [], []>} : vector<8x8xbf16>, vector<8x32xbf16>, vector<8x32xf32> -> vector<8x32xf32>
    %56 = arith.addf %34, %55 : vector<8x32xf32>
    %57 = vector.extract_strided_slice %8 {offsets = [0, 16], sizes = [8, 8], strides = [1, 1]} : vector<16x32xbf16> to vector<8x8xbf16>
    %58 = vector.extract_strided_slice %10 {offsets = [0, 16], sizes = [8, 8], strides = [1, 1]} : vector<16x32xbf16> to vector<8x8xbf16>
    %59 = vector.extract_strided_slice %12 {offsets = [0, 16], sizes = [8, 8], strides = [1, 1]} : vector<16x32xbf16> to vector<8x8xbf16>
    %cst_19 = arith.constant dense<0.000000e+00> : vector<8x8xf32>
    %60 = tpu.matmul %57, %58, %cst_19 {dimension_numbers = #tpu.dot_dimension_numbers<[1], [1], [0], [0], [0, 0, 1, 0], [], []>} : vector<8x8xbf16>, vector<8x8xbf16>, vector<8x8xf32> -> vector<8x8xf32>
    %cst_20 = arith.constant 0.353553385 : f32
    %61 = vector.broadcast %cst_20 : f32 to vector<8x8xf32>
    %62 = arith.mulf %60, %61 : vector<8x8xf32>
    %cst_21 = arith.constant dense<0xFF800000> : vector<8xf32>
    %63 = vector.multi_reduction <maximumf>, %62, %cst_21 [1] : vector<8x8xf32> to vector<8xf32>
    %64 = vector.shape_cast %63 : vector<8xf32> to vector<8x1xf32>
    %65 = vector.broadcast %64 : vector<8x1xf32> to vector<8x8xf32>
    %66 = arith.subf %62, %65 : vector<8x8xf32>
    %67 = math.exp %66 : vector<8x8xf32>
    %cst_22 = arith.constant dense<0.000000e+00> : vector<8xf32>
    %68 = vector.multi_reduction <add>, %67, %cst_22 [1] : vector<8x8xf32> to vector<8xf32>
    %69 = vector.shape_cast %68 : vector<8xf32> to vector<8x1xf32>
    %70 = tpu.reciprocal %69 {approx = true} : vector<8x1xf32> -> vector<8x1xf32>
    %71 = vector.broadcast %70 : vector<8x1xf32> to vector<8x8xf32>
    %72 = arith.mulf %67, %71 : vector<8x8xf32>
    %73 = arith.truncf %72 : vector<8x8xf32> to vector<8x8xbf16>
    %cst_23 = arith.constant dense<0.000000e+00> : vector<8x8xf32>
    %74 = tpu.matmul %73, %59, %cst_23 {dimension_numbers = #tpu.dot_dimension_numbers<[1], [0], [0], [1], [0, 0, 1, 1], [], []>} : vector<8x8xbf16>, vector<8x8xbf16>, vector<8x8xf32> -> vector<8x8xf32>
    %75 = arith.truncf %74 : vector<8x8xf32> to vector<8x8xbf16>
    %76 = vector.extract_strided_slice %13 {offsets = [16, 0], sizes = [8, 32], strides = [1, 1]} : vector<32x32xbf16> to vector<8x32xbf16>
    %cst_24 = arith.constant dense<0.000000e+00> : vector<8x32xf32>
    %77 = tpu.matmul %75, %76, %cst_24 {dimension_numbers = #tpu.dot_dimension_numbers<[1], [0], [0], [1], [0, 0, 1, 1], [], []>} : vector<8x8xbf16>, vector<8x32xbf16>, vector<8x32xf32> -> vector<8x32xf32>
    %78 = arith.addf %56, %77 : vector<8x32xf32>
    %79 = vector.extract_strided_slice %8 {offsets = [0, 24], sizes = [8, 8], strides = [1, 1]} : vector<16x32xbf16> to vector<8x8xbf16>
    %80 = vector.extract_strided_slice %10 {offsets = [0, 24], sizes = [8, 8], strides = [1, 1]} : vector<16x32xbf16> to vector<8x8xbf16>
    %81 = vector.extract_strided_slice %12 {offsets = [0, 24], sizes = [8, 8], strides = [1, 1]} : vector<16x32xbf16> to vector<8x8xbf16>
    %cst_25 = arith.constant dense<0.000000e+00> : vector<8x8xf32>
    %82 = tpu.matmul %79, %80, %cst_25 {dimension_numbers = #tpu.dot_dimension_numbers<[1], [1], [0], [0], [0, 0, 1, 0], [], []>} : vector<8x8xbf16>, vector<8x8xbf16>, vector<8x8xf32> -> vector<8x8xf32>
    %cst_26 = arith.constant 0.353553385 : f32
    %83 = vector.broadcast %cst_26 : f32 to vector<8x8xf32>
    %84 = arith.mulf %82, %83 : vector<8x8xf32>
    %cst_27 = arith.constant dense<0xFF800000> : vector<8xf32>
    %85 = vector.multi_reduction <maximumf>, %84, %cst_27 [1] : vector<8x8xf32> to vector<8xf32>
    %86 = vector.shape_cast %85 : vector<8xf32> to vector<8x1xf32>
    %87 = vector.broadcast %86 : vector<8x1xf32> to vector<8x8xf32>
    %88 = arith.subf %84, %87 : vector<8x8xf32>
    %89 = math.exp %88 : vector<8x8xf32>
    %cst_28 = arith.constant dense<0.000000e+00> : vector<8xf32>
    %90 = vector.multi_reduction <add>, %89, %cst_28 [1] : vector<8x8xf32> to vector<8xf32>
    %91 = vector.shape_cast %90 : vector<8xf32> to vector<8x1xf32>
    %92 = tpu.reciprocal %91 {approx = true} : vector<8x1xf32> -> vector<8x1xf32>
    %93 = vector.broadcast %92 : vector<8x1xf32> to vector<8x8xf32>
    %94 = arith.mulf %89, %93 : vector<8x8xf32>
    %95 = arith.truncf %94 : vector<8x8xf32> to vector<8x8xbf16>
    %cst_29 = arith.constant dense<0.000000e+00> : vector<8x8xf32>
    %96 = tpu.matmul %95, %81, %cst_29 {dimension_numbers = #tpu.dot_dimension_numbers<[1], [0], [0], [1], [0, 0, 1, 1], [], []>} : vector<8x8xbf16>, vector<8x8xbf16>, vector<8x8xf32> -> vector<8x8xf32>
    %97 = arith.truncf %96 : vector<8x8xf32> to vector<8x8xbf16>
    %98 = vector.extract_strided_slice %13 {offsets = [24, 0], sizes = [8, 32], strides = [1, 1]} : vector<32x32xbf16> to vector<8x32xbf16>
    %cst_30 = arith.constant dense<0.000000e+00> : vector<8x32xf32>
    %99 = tpu.matmul %97, %98, %cst_30 {dimension_numbers = #tpu.dot_dimension_numbers<[1], [0], [0], [1], [0, 0, 1, 1], [], []>} : vector<8x8xbf16>, vector<8x32xbf16>, vector<8x32xf32> -> vector<8x32xf32>
    %100 = arith.addf %78, %99 : vector<8x32xf32>
    %101 = vector.extract_strided_slice %8 {offsets = [8, 0], sizes = [8, 8], strides = [1, 1]} : vector<16x32xbf16> to vector<8x8xbf16>
    %102 = vector.extract_strided_slice %10 {offsets = [8, 0], sizes = [8, 8], strides = [1, 1]} : vector<16x32xbf16> to vector<8x8xbf16>
    %103 = vector.extract_strided_slice %12 {offsets = [8, 0], sizes = [8, 8], strides = [1, 1]} : vector<16x32xbf16> to vector<8x8xbf16>
    %cst_31 = arith.constant dense<0.000000e+00> : vector<8x8xf32>
    %104 = tpu.matmul %101, %102, %cst_31 {dimension_numbers = #tpu.dot_dimension_numbers<[1], [1], [0], [0], [0, 0, 1, 0], [], []>} : vector<8x8xbf16>, vector<8x8xbf16>, vector<8x8xf32> -> vector<8x8xf32>
    %cst_32 = arith.constant 0.353553385 : f32
    %105 = vector.broadcast %cst_32 : f32 to vector<8x8xf32>
    %106 = arith.mulf %104, %105 : vector<8x8xf32>
    %cst_33 = arith.constant dense<0xFF800000> : vector<8xf32>
    %107 = vector.multi_reduction <maximumf>, %106, %cst_33 [1] : vector<8x8xf32> to vector<8xf32>
    %108 = vector.shape_cast %107 : vector<8xf32> to vector<8x1xf32>
    %109 = vector.broadcast %108 : vector<8x1xf32> to vector<8x8xf32>
    %110 = arith.subf %106, %109 : vector<8x8xf32>
    %111 = math.exp %110 : vector<8x8xf32>
    %cst_34 = arith.constant dense<0.000000e+00> : vector<8xf32>
    %112 = vector.multi_reduction <add>, %111, %cst_34 [1] : vector<8x8xf32> to vector<8xf32>
    %113 = vector.shape_cast %112 : vector<8xf32> to vector<8x1xf32>
    %114 = tpu.reciprocal %113 {approx = true} : vector<8x1xf32> -> vector<8x1xf32>
    %115 = vector.broadcast %114 : vector<8x1xf32> to vector<8x8xf32>
    %116 = arith.mulf %111, %115 : vector<8x8xf32>
    %117 = arith.truncf %116 : vector<8x8xf32> to vector<8x8xbf16>
    %cst_35 = arith.constant dense<0.000000e+00> : vector<8x8xf32>
    %118 = tpu.matmul %117, %103, %cst_35 {dimension_numbers = #tpu.dot_dimension_numbers<[1], [0], [0], [1], [0, 0, 1, 1], [], []>} : vector<8x8xbf16>, vector<8x8xbf16>, vector<8x8xf32> -> vector<8x8xf32>
    %119 = arith.truncf %118 : vector<8x8xf32> to vector<8x8xbf16>
    %120 = vector.extract_strided_slice %13 {offsets = [0, 0], sizes = [8, 32], strides = [1, 1]} : vector<32x32xbf16> to vector<8x32xbf16>
    %cst_36 = arith.constant dense<0.000000e+00> : vector<8x32xf32>
    %121 = tpu.matmul %119, %120, %cst_36 {dimension_numbers = #tpu.dot_dimension_numbers<[1], [0], [0], [1], [0, 0, 1, 1], [], []>} : vector<8x8xbf16>, vector<8x32xbf16>, vector<8x32xf32> -> vector<8x32xf32>
    %122 = vector.extract_strided_slice %8 {offsets = [8, 8], sizes = [8, 8], strides = [1, 1]} : vector<16x32xbf16> to vector<8x8xbf16>
    %123 = vector.extract_strided_slice %10 {offsets = [8, 8], sizes = [8, 8], strides = [1, 1]} : vector<16x32xbf16> to vector<8x8xbf16>
    %124 = vector.extract_strided_slice %12 {offsets = [8, 8], sizes = [8, 8], strides = [1, 1]} : vector<16x32xbf16> to vector<8x8xbf16>
    %cst_37 = arith.constant dense<0.000000e+00> : vector<8x8xf32>
    %125 = tpu.matmul %122, %123, %cst_37 {dimension_numbers = #tpu.dot_dimension_numbers<[1], [1], [0], [0], [0, 0, 1, 0], [], []>} : vector<8x8xbf16>, vector<8x8xbf16>, vector<8x8xf32> -> vector<8x8xf32>
    %cst_38 = arith.constant 0.353553385 : f32
    %126 = vector.broadcast %cst_38 : f32 to vector<8x8xf32>
    %127 = arith.mulf %125, %126 : vector<8x8xf32>
    %cst_39 = arith.constant dense<0xFF800000> : vector<8xf32>
    %128 = vector.multi_reduction <maximumf>, %127, %cst_39 [1] : vector<8x8xf32> to vector<8xf32>
    %129 = vector.shape_cast %128 : vector<8xf32> to vector<8x1xf32>
    %130 = vector.broadcast %129 : vector<8x1xf32> to vector<8x8xf32>
    %131 = arith.subf %127, %130 : vector<8x8xf32>
    %132 = math.exp %131 : vector<8x8xf32>
    %cst_40 = arith.constant dense<0.000000e+00> : vector<8xf32>
    %133 = vector.multi_reduction <add>, %132, %cst_40 [1] : vector<8x8xf32> to vector<8xf32>
    %134 = vector.shape_cast %133 : vector<8xf32> to vector<8x1xf32>
    %135 = tpu.reciprocal %134 {approx = true} : vector<8x1xf32> -> vector<8x1xf32>
    %136 = vector.broadcast %135 : vector<8x1xf32> to vector<8x8xf32>
    %137 = arith.mulf %132, %136 : vector<8x8xf32>
    %138 = arith.truncf %137 : vector<8x8xf32> to vector<8x8xbf16>
    %cst_41 = arith.constant dense<0.000000e+00> : vector<8x8xf32>
    %139 = tpu.matmul %138, %124, %cst_41 {dimension_numbers = #tpu.dot_dimension_numbers<[1], [0], [0], [1], [0, 0, 1, 1], [], []>} : vector<8x8xbf16>, vector<8x8xbf16>, vector<8x8xf32> -> vector<8x8xf32>
    %140 = arith.truncf %139 : vector<8x8xf32> to vector<8x8xbf16>
    %141 = vector.extract_strided_slice %13 {offsets = [8, 0], sizes = [8, 32], strides = [1, 1]} : vector<32x32xbf16> to vector<8x32xbf16>
    %cst_42 = arith.constant dense<0.000000e+00> : vector<8x32xf32>
    %142 = tpu.matmul %140, %141, %cst_42 {dimension_numbers = #tpu.dot_dimension_numbers<[1], [0], [0], [1], [0, 0, 1, 1], [], []>} : vector<8x8xbf16>, vector<8x32xbf16>, vector<8x32xf32> -> vector<8x32xf32>
    %143 = arith.addf %121, %142 : vector<8x32xf32>
    %144 = vector.extract_strided_slice %8 {offsets = [8, 16], sizes = [8, 8], strides = [1, 1]} : vector<16x32xbf16> to vector<8x8xbf16>
    %145 = vector.extract_strided_slice %10 {offsets = [8, 16], sizes = [8, 8], strides = [1, 1]} : vector<16x32xbf16> to vector<8x8xbf16>
    %146 = vector.extract_strided_slice %12 {offsets = [8, 16], sizes = [8, 8], strides = [1, 1]} : vector<16x32xbf16> to vector<8x8xbf16>
    %cst_43 = arith.constant dense<0.000000e+00> : vector<8x8xf32>
    %147 = tpu.matmul %144, %145, %cst_43 {dimension_numbers = #tpu.dot_dimension_numbers<[1], [1], [0], [0], [0, 0, 1, 0], [], []>} : vector<8x8xbf16>, vector<8x8xbf16>, vector<8x8xf32> -> vector<8x8xf32>
    %cst_44 = arith.constant 0.353553385 : f32
    %148 = vector.broadcast %cst_44 : f32 to vector<8x8xf32>
    %149 = arith.mulf %147, %148 : vector<8x8xf32>
    %cst_45 = arith.constant dense<0xFF800000> : vector<8xf32>
    %150 = vector.multi_reduction <maximumf>, %149, %cst_45 [1] : vector<8x8xf32> to vector<8xf32>
    %151 = vector.shape_cast %150 : vector<8xf32> to vector<8x1xf32>
    %152 = vector.broadcast %151 : vector<8x1xf32> to vector<8x8xf32>
    %153 = arith.subf %149, %152 : vector<8x8xf32>
    %154 = math.exp %153 : vector<8x8xf32>
    %cst_46 = arith.constant dense<0.000000e+00> : vector<8xf32>
    %155 = vector.multi_reduction <add>, %154, %cst_46 [1] : vector<8x8xf32> to vector<8xf32>
    %156 = vector.shape_cast %155 : vector<8xf32> to vector<8x1xf32>
    %157 = tpu.reciprocal %156 {approx = true} : vector<8x1xf32> -> vector<8x1xf32>
    %158 = vector.broadcast %157 : vector<8x1xf32> to vector<8x8xf32>
    %159 = arith.mulf %154, %158 : vector<8x8xf32>
    %160 = arith.truncf %159 : vector<8x8xf32> to vector<8x8xbf16>
    %cst_47 = arith.constant dense<0.000000e+00> : vector<8x8xf32>
    %161 = tpu.matmul %160, %146, %cst_47 {dimension_numbers = #tpu.dot_dimension_numbers<[1], [0], [0], [1], [0, 0, 1, 1], [], []>} : vector<8x8xbf16>, vector<8x8xbf16>, vector<8x8xf32> -> vector<8x8xf32>
    %162 = arith.truncf %161 : vector<8x8xf32> to vector<8x8xbf16>
    %163 = vector.extract_strided_slice %13 {offsets = [16, 0], sizes = [8, 32], strides = [1, 1]} : vector<32x32xbf16> to vector<8x32xbf16>
    %cst_48 = arith.constant dense<0.000000e+00> : vector<8x32xf32>
    %164 = tpu.matmul %162, %163, %cst_48 {dimension_numbers = #tpu.dot_dimension_numbers<[1], [0], [0], [1], [0, 0, 1, 1], [], []>} : vector<8x8xbf16>, vector<8x32xbf16>, vector<8x32xf32> -> vector<8x32xf32>
    %165 = arith.addf %143, %164 : vector<8x32xf32>
    %166 = vector.extract_strided_slice %8 {offsets = [8, 24], sizes = [8, 8], strides = [1, 1]} : vector<16x32xbf16> to vector<8x8xbf16>
    %167 = vector.extract_strided_slice %10 {offsets = [8, 24], sizes = [8, 8], strides = [1, 1]} : vector<16x32xbf16> to vector<8x8xbf16>
    %168 = vector.extract_strided_slice %12 {offsets = [8, 24], sizes = [8, 8], strides = [1, 1]} : vector<16x32xbf16> to vector<8x8xbf16>
    %cst_49 = arith.constant dense<0.000000e+00> : vector<8x8xf32>
    %169 = tpu.matmul %166, %167, %cst_49 {dimension_numbers = #tpu.dot_dimension_numbers<[1], [1], [0], [0], [0, 0, 1, 0], [], []>} : vector<8x8xbf16>, vector<8x8xbf16>, vector<8x8xf32> -> vector<8x8xf32>
    %cst_50 = arith.constant 0.353553385 : f32
    %170 = vector.broadcast %cst_50 : f32 to vector<8x8xf32>
    %171 = arith.mulf %169, %170 : vector<8x8xf32>
    %cst_51 = arith.constant dense<0xFF800000> : vector<8xf32>
    %172 = vector.multi_reduction <maximumf>, %171, %cst_51 [1] : vector<8x8xf32> to vector<8xf32>
    %173 = vector.shape_cast %172 : vector<8xf32> to vector<8x1xf32>
    %174 = vector.broadcast %173 : vector<8x1xf32> to vector<8x8xf32>
    %175 = arith.subf %171, %174 : vector<8x8xf32>
    %176 = math.exp %175 : vector<8x8xf32>
    %cst_52 = arith.constant dense<0.000000e+00> : vector<8xf32>
    %177 = vector.multi_reduction <add>, %176, %cst_52 [1] : vector<8x8xf32> to vector<8xf32>
    %178 = vector.shape_cast %177 : vector<8xf32> to vector<8x1xf32>
    %179 = tpu.reciprocal %178 {approx = true} : vector<8x1xf32> -> vector<8x1xf32>
    %180 = vector.broadcast %179 : vector<8x1xf32> to vector<8x8xf32>
    %181 = arith.mulf %176, %180 : vector<8x8xf32>
    %182 = arith.truncf %181 : vector<8x8xf32> to vector<8x8xbf16>
    %cst_53 = arith.constant dense<0.000000e+00> : vector<8x8xf32>
    %183 = tpu.matmul %182, %168, %cst_53 {dimension_numbers = #tpu.dot_dimension_numbers<[1], [0], [0], [1], [0, 0, 1, 1], [], []>} : vector<8x8xbf16>, vector<8x8xbf16>, vector<8x8xf32> -> vector<8x8xf32>
    %184 = arith.truncf %183 : vector<8x8xf32> to vector<8x8xbf16>
    %185 = vector.extract_strided_slice %13 {offsets = [24, 0], sizes = [8, 32], strides = [1, 1]} : vector<32x32xbf16> to vector<8x32xbf16>
    %cst_54 = arith.constant dense<0.000000e+00> : vector<8x32xf32>
    %186 = tpu.matmul %184, %185, %cst_54 {dimension_numbers = #tpu.dot_dimension_numbers<[1], [0], [0], [1], [0, 0, 1, 1], [], []>} : vector<8x8xbf16>, vector<8x32xbf16>, vector<8x32xf32> -> vector<8x32xf32>
    %187 = arith.addf %165, %186 : vector<8x32xf32>
    %188 = tpu.concatenate %100, %187 in 0 : vector<8x32xf32>, vector<8x32xf32> -> vector<16x32xf32>
    %c0_55 = arith.constant 0 : index
    %c0_56 = arith.constant 0 : index
    %189 = vector.load %arg5[%c0_55, %c0_56] : memref<1x32xf32, #tpu.memory_space<vmem>>, vector<1x32xf32>
    %190 = vector.broadcast %189 : vector<1x32xf32> to vector<16x32xf32>
    %191 = arith.addf %188, %190 : vector<16x32xf32>
    %192 = arith.addf %0, %191 : vector<16x32xf32>
    %c0_57 = arith.constant 0 : index
    %c0_58 = arith.constant 0 : index
    %193 = vector.load %arg6[%c0_57, %c0_58] : memref<1x32xf32, #tpu.memory_space<vmem>>, vector<1x32xf32>
    %c0_59 = arith.constant 0 : index
    %c0_60 = arith.constant 0 : index
    %194 = vector.load %arg7[%c0_59, %c0_60] : memref<1x32xf32, #tpu.memory_space<vmem>>, vector<1x32xf32>
    %cst_61 = arith.constant dense<0.000000e+00> : vector<16xf32>
    %195 = vector.multi_reduction <add>, %192, %cst_61 [1] : vector<16x32xf32> to vector<16xf32>
    %196 = vector.shape_cast %195 : vector<16xf32> to vector<16x1xf32>
    %cst_62 = arith.constant 3.200000e+01 : f32
    %197 = vector.broadcast %cst_62 : f32 to vector<16x1xf32>
    %198 = arith.divf %196, %197 : vector<16x1xf32>
    %199 = vector.broadcast %198 : vector<16x1xf32> to vector<16x32xf32>
    %200 = arith.subf %192, %199 : vector<16x32xf32>
    %201 = arith.mulf %200, %200 : vector<16x32xf32>
    %cst_63 = arith.constant dense<0.000000e+00> : vector<16xf32>
    %202 = vector.multi_reduction <add>, %201, %cst_63 [1] : vector<16x32xf32> to vector<16xf32>
    %203 = vector.shape_cast %202 : vector<16xf32> to vector<16x1xf32>
    %cst_64 = arith.constant 3.200000e+01 : f32
    %204 = vector.broadcast %cst_64 : f32 to vector<16x1xf32>
    %205 = arith.divf %203, %204 : vector<16x1xf32>
    %206 = vector.broadcast %198 : vector<16x1xf32> to vector<16x32xf32>
    %207 = arith.subf %192, %206 : vector<16x32xf32>
    %cst_65 = arith.constant 9.99999996E-13 : f32
    %208 = vector.broadcast %cst_65 : f32 to vector<16x1xf32>
    %209 = arith.addf %205, %208 : vector<16x1xf32>
    %210 = math.rsqrt %209 : vector<16x1xf32>
    %211 = vector.broadcast %210 : vector<16x1xf32> to vector<16x32xf32>
    %212 = arith.mulf %207, %211 : vector<16x32xf32>
    %213 = vector.broadcast %193 : vector<1x32xf32> to vector<16x32xf32>
    %214 = arith.mulf %212, %213 : vector<16x32xf32>
    %215 = vector.broadcast %194 : vector<1x32xf32> to vector<16x32xf32>
    %216 = arith.addf %214, %215 : vector<16x32xf32>
    %217 = arith.truncf %216 : vector<16x32xf32> to vector<16x32xbf16>
    %c0_66 = arith.constant 0 : index
    %c0_67 = arith.constant 0 : index
    %218 = vector.load %arg8[%c0_66, %c0_67] : memref<32x128xbf16, #tpu.memory_space<vmem>>, vector<32x128xbf16>
    %cst_68 = arith.constant dense<0.000000e+00> : vector<16x128xf32>
    %219 = tpu.matmul %217, %218, %cst_68 {dimension_numbers = #tpu.dot_dimension_numbers<[1], [0], [0], [1], [0, 0, 1, 1], [], []>} : vector<16x32xbf16>, vector<32x128xbf16>, vector<16x128xf32> -> vector<16x128xf32>
    %c0_69 = arith.constant 0 : index
    %c0_70 = arith.constant 0 : index
    %220 = vector.load %arg9[%c0_69, %c0_70] : memref<1x128xf32, #tpu.memory_space<vmem>>, vector<1x128xf32>
    %221 = vector.broadcast %220 : vector<1x128xf32> to vector<16x128xf32>
    %222 = arith.addf %219, %221 : vector<16x128xf32>
    %cst_71 = arith.constant 5.000000e-01 : f32
    %223 = vector.broadcast %cst_71 : f32 to vector<16x128xf32>
    %224 = arith.mulf %223, %222 : vector<16x128xf32>
    %cst_72 = arith.constant 4.471500e-02 : f32
    %225 = vector.broadcast %cst_72 : f32 to vector<16x128xf32>
    %226 = arith.mulf %225, %222 : vector<16x128xf32>
    %227 = arith.mulf %226, %222 : vector<16x128xf32>
    %228 = arith.mulf %227, %222 : vector<16x128xf32>
    %229 = arith.addf %222, %228 : vector<16x128xf32>
    %cst_73 = arith.constant 0.797884583 : f32
    %230 = vector.broadcast %cst_73 : f32 to vector<16x128xf32>
    %231 = arith.mulf %230, %229 : vector<16x128xf32>
    %232 = math.tanh %231 : vector<16x128xf32>
    %cst_74 = arith.constant 1.000000e+00 : f32
    %233 = vector.broadcast %cst_74 : f32 to vector<16x128xf32>
    %234 = arith.addf %233, %232 : vector<16x128xf32>
    %235 = arith.mulf %224, %234 : vector<16x128xf32>
    %236 = arith.truncf %235 : vector<16x128xf32> to vector<16x128xbf16>
    %c0_75 = arith.constant 0 : index
    %c0_76 = arith.constant 0 : index
    %237 = vector.load %arg10[%c0_75, %c0_76] : memref<128x32xbf16, #tpu.memory_space<vmem>>, vector<128x32xbf16>
    %cst_77 = arith.constant dense<0.000000e+00> : vector<16x32xf32>
    %238 = tpu.matmul %236, %237, %cst_77 {dimension_numbers = #tpu.dot_dimension_numbers<[1], [0], [0], [1], [0, 0, 1, 1], [], []>} : vector<16x128xbf16>, vector<128x32xbf16>, vector<16x32xf32> -> vector<16x32xf32>
    %c0_78 = arith.constant 0 : index
    %c0_79 = arith.constant 0 : index
    %239 = vector.load %arg11[%c0_78, %c0_79] : memref<1x32xf32, #tpu.memory_space<vmem>>, vector<1x32xf32>
    %240 = vector.broadcast %239 : vector<1x32xf32> to vector<16x32xf32>
    %241 = arith.addf %238, %240 : vector<16x32xf32>
    %242 = arith.addf %216, %241 : vector<16x32xf32>
    %c0_80 = arith.constant 0 : index
    %c0_81 = arith.constant 0 : index
    %243 = vector.load %arg12[%c0_80, %c0_81] : memref<1x32xf32, #tpu.memory_space<vmem>>, vector<1x32xf32>
    %c0_82 = arith.constant 0 : index
    %c0_83 = arith.constant 0 : index
    %244 = vector.load %arg13[%c0_82, %c0_83] : memref<1x32xf32, #tpu.memory_space<vmem>>, vector<1x32xf32>
    %cst_84 = arith.constant dense<0.000000e+00> : vector<16xf32>
    %245 = vector.multi_reduction <add>, %242, %cst_84 [1] : vector<16x32xf32> to vector<16xf32>
    %246 = vector.shape_cast %245 : vector<16xf32> to vector<16x1xf32>
    %cst_85 = arith.constant 3.200000e+01 : f32
    %247 = vector.broadcast %cst_85 : f32 to vector<16x1xf32>
    %248 = arith.divf %246, %247 : vector<16x1xf32>
    %249 = vector.broadcast %248 : vector<16x1xf32> to vector<16x32xf32>
    %250 = arith.subf %242, %249 : vector<16x32xf32>
    %251 = arith.mulf %250, %250 : vector<16x32xf32>
    %cst_86 = arith.constant dense<0.000000e+00> : vector<16xf32>
    %252 = vector.multi_reduction <add>, %251, %cst_86 [1] : vector<16x32xf32> to vector<16xf32>
    %253 = vector.shape_cast %252 : vector<16xf32> to vector<16x1xf32>
    %cst_87 = arith.constant 3.200000e+01 : f32
    %254 = vector.broadcast %cst_87 : f32 to vector<16x1xf32>
    %255 = arith.divf %253, %254 : vector<16x1xf32>
    %256 = vector.broadcast %248 : vector<16x1xf32> to vector<16x32xf32>
    %257 = arith.subf %242, %256 : vector<16x32xf32>
    %cst_88 = arith.constant 9.99999996E-13 : f32
    %258 = vector.broadcast %cst_88 : f32 to vector<16x1xf32>
    %259 = arith.addf %255, %258 : vector<16x1xf32>
    %260 = math.rsqrt %259 : vector<16x1xf32>
    %261 = vector.broadcast %260 : vector<16x1xf32> to vector<16x32xf32>
    %262 = arith.mulf %257, %261 : vector<16x32xf32>
    %263 = vector.broadcast %243 : vector<1x32xf32> to vector<16x32xf32>
    %264 = arith.mulf %262, %263 : vector<16x32xf32>
    %265 = vector.broadcast %244 : vector<1x32xf32> to vector<16x32xf32>
    %266 = arith.addf %264, %265 : vector<16x32xf32>
    %267 = arith.truncf %266 : vector<16x32xf32> to vector<16x32xbf16>
    %c0_89 = arith.constant 0 : index
    %c0_90 = arith.constant 0 : index
    %268 = vector.load %arg14[%c0_89, %c0_90] : memref<32x128xbf16, #tpu.memory_space<vmem>>, vector<32x128xbf16>
    %cst_91 = arith.constant dense<0.000000e+00> : vector<16x128xf32>
    %269 = tpu.matmul %267, %268, %cst_91 {dimension_numbers = #tpu.dot_dimension_numbers<[1], [0], [0], [1], [0, 0, 1, 1], [], []>} : vector<16x32xbf16>, vector<32x128xbf16>, vector<16x128xf32> -> vector<16x128xf32>
    %c0_92 = arith.constant 0 : index
    %c0_93 = arith.constant 0 : index
    %270 = vector.load %arg15[%c0_92, %c0_93] : memref<1x128xf32, #tpu.memory_space<vmem>>, vector<1x128xf32>
    %271 = vector.broadcast %270 : vector<1x128xf32> to vector<16x128xf32>
    %272 = arith.addf %269, %271 : vector<16x128xf32>
    %c0_94 = arith.constant 0 : index
    %c0_95 = arith.constant 0 : index
    %273 = vector.load %arg18[%c0_94, %c0_95] : memref<16x128xf32, #tpu.memory_space<vmem>>, vector<16x128xf32>
    tpu.vector_store %arg18[%c0_94, %c0_95], %272 {strides = array<i32>} : memref<16x128xf32, #tpu.memory_space<vmem>>, vector<16x128xf32>,
    %cst_96 = arith.constant 5.000000e-01 : f32
    %274 = vector.broadcast %cst_96 : f32 to vector<16x32xf32>
    %275 = arith.mulf %274, %266 : vector<16x32xf32>
    %cst_97 = arith.constant 4.471500e-02 : f32
    %276 = vector.broadcast %cst_97 : f32 to vector<16x32xf32>
    %277 = arith.mulf %276, %266 : vector<16x32xf32>
    %278 = arith.mulf %277, %266 : vector<16x32xf32>
    %279 = arith.mulf %278, %266 : vector<16x32xf32>
    %280 = arith.addf %266, %279 : vector<16x32xf32>
    %cst_98 = arith.constant 0.797884583 : f32
    %281 = vector.broadcast %cst_98 : f32 to vector<16x32xf32>
    %282 = arith.mulf %281, %280 : vector<16x32xf32>
    %283 = math.tanh %282 : vector<16x32xf32>
    %cst_99 = arith.constant 1.000000e+00 : f32
    %284 = vector.broadcast %cst_99 : f32 to vector<16x32xf32>
    %285 = arith.addf %284, %283 : vector<16x32xf32>
    %286 = arith.mulf %275, %285 : vector<16x32xf32>
    %287 = arith.truncf %286 : vector<16x32xf32> to vector<16x32xbf16>
    %c0_100 = arith.constant 0 : index
    %c0_101 = arith.constant 0 : index
    %288 = vector.load %arg16[%c0_100, %c0_101] : memref<32x128xbf16, #tpu.memory_space<vmem>>, vector<32x128xbf16>
    %cst_102 = arith.constant dense<0.000000e+00> : vector<16x128xf32>
    %289 = tpu.matmul %287, %288, %cst_102 {dimension_numbers = #tpu.dot_dimension_numbers<[1], [0], [0], [1], [0, 0, 1, 1], [], []>} : vector<16x32xbf16>, vector<32x128xbf16>, vector<16x128xf32> -> vector<16x128xf32>
    %c0_103 = arith.constant 0 : index
    %c0_104 = arith.constant 0 : index
    %290 = vector.load %arg17[%c0_103, %c0_104] : memref<1x128xf32, #tpu.memory_space<vmem>>, vector<1x128xf32>
    %291 = vector.broadcast %290 : vector<1x128xf32> to vector<16x128xf32>
    %292 = arith.addf %289, %291 : vector<16x128xf32>
    %c0_105 = arith.constant 0 : index
    %c0_106 = arith.constant 0 : index
    %293 = vector.load %arg19[%c0_105, %c0_106] : memref<16x128xf32, #tpu.memory_space<vmem>>, vector<16x128xf32>
    tpu.vector_store %arg19[%c0_105, %c0_106], %292 {strides = array<i32>} : memref<16x128xf32, #tpu.memory_space<vmem>>, vector<16x128xf32>,
    return
  }
  func.func @transform_0(%arg0: i32) -> (i32, i32) {
    %c0_i32 = arith.constant 0 : i32
    %c0_i32_0 = arith.constant 0 : i32
    return %arg0, %c0_i32 : i32, i32
  }
  func.func @transform_1(%arg0: i32) -> (i32, i32) {
    %c0_i32 = arith.constant 0 : i32
    %c0_i32_0 = arith.constant 0 : i32
    %c0_i32_1 = arith.constant 0 : i32
    return %c0_i32, %c0_i32_0 : i32, i32
  }
  func.func @transform_2(%arg0: i32) -> (i32, i32) {
    %c0_i32 = arith.constant 0 : i32
    %c0_i32_0 = arith.constant 0 : i32
    %c0_i32_1 = arith.constant 0 : i32
    return %c0_i32, %c0_i32_0 : i32, i32
  }
  func.func @transform_3(%arg0: i32) -> (i32, i32) {
    %c0_i32 = arith.constant 0 : i32
    %c0_i32_0 = arith.constant 0 : i32
    %c0_i32_1 = arith.constant 0 : i32
    return %c0_i32, %c0_i32_0 : i32, i32
  }
  func.func @transform_4(%arg0: i32) -> (i32, i32) {
    %c0_i32 = arith.constant 0 : i32
    %c0_i32_0 = arith.constant 0 : i32
    %c0_i32_1 = arith.constant 0 : i32
    return %c0_i32, %c0_i32_0 : i32, i32
  }
  func.func @transform_5(%arg0: i32) -> (i32, i32) {
    %c0_i32 = arith.constant 0 : i32
    %c0_i32_0 = arith.constant 0 : i32
    %c0_i32_1 = arith.constant 0 : i32
    return %c0_i32, %c0_i32_0 : i32, i32
  }
  func.func @transform_6(%arg0: i32) -> (i32, i32) {
    %c0_i32 = arith.constant 0 : i32
    %c0_i32_0 = arith.constant 0 : i32
    %c0_i32_1 = arith.constant 0 : i32
    return %c0_i32, %c0_i32_0 : i32, i32
  }
  func.func @transform_7(%arg0: i32) -> (i32, i32) {
    %c0_i32 = arith.constant 0 : i32
    %c0_i32_0 = arith.constant 0 : i32
    %c0_i32_1 = arith.constant 0 : i32
    return %c0_i32, %c0_i32_0 : i32, i32
  }
  func.func @transform_8(%arg0: i32) -> (i32, i32) {
    %c0_i32 = arith.constant 0 : i32
    %c0_i32_0 = arith.constant 0 : i32
    %c0_i32_1 = arith.constant 0 : i32
    return %c0_i32, %c0_i32_0 : i32, i32
  }
  func.func @transform_9(%arg0: i32) -> (i32, i32) {
    %c0_i32 = arith.constant 0 : i32
    %c0_i32_0 = arith.constant 0 : i32
    %c0_i32_1 = arith.constant 0 : i32
    return %c0_i32, %c0_i32_0 : i32, i32
  }
  func.func @transform_10(%arg0: i32) -> (i32, i32) {
    %c0_i32 = arith.constant 0 : i32
    %c0_i32_0 = arith.constant 0 : i32
    %c0_i32_1 = arith.constant 0 : i32
    return %c0_i32, %c0_i32_0 : i32, i32
  }
  func.func @transform_11(%arg0: i32) -> (i32, i32) {
    %c0_i32 = arith.constant 0 : i32
    %c0_i32_0 = arith.constant 0 : i32
    %c0_i32_1 = arith.constant 0 : i32
    return %c0_i32, %c0_i32_0 : i32, i32
  }
  func.func @transform_12(%arg0: i32) -> (i32, i32) {
    %c0_i32 = arith.constant 0 : i32
    %c0_i32_0 = arith.constant 0 : i32
    %c0_i32_1 = arith.constant 0 : i32
    return %c0_i32, %c0_i32_0 : i32, i32
  }
  func.func @transform_13(%arg0: i32) -> (i32, i32) {
    %c0_i32 = arith.constant 0 : i32
    %c0_i32_0 = arith.constant 0 : i32
    %c0_i32_1 = arith.constant 0 : i32
    return %c0_i32, %c0_i32_0 : i32, i32
  }
  func.func @transform_14(%arg0: i32) -> (i32, i32) {
    %c0_i32 = arith.constant 0 : i32
    %c0_i32_0 = arith.constant 0 : i32
    %c0_i32_1 = arith.constant 0 : i32
    return %c0_i32, %c0_i32_0 : i32, i32
  }
  func.func @transform_15(%arg0: i32) -> (i32, i32) {
    %c0_i32 = arith.constant 0 : i32
    %c0_i32_0 = arith.constant 0 : i32
    %c0_i32_1 = arith.constant 0 : i32
    return %c0_i32, %c0_i32_0 : i32, i32
  }
  func.func @transform_16(%arg0: i32) -> (i32, i32) {
    %c0_i32 = arith.constant 0 : i32
    %c0_i32_0 = arith.constant 0 : i32
    %c0_i32_1 = arith.constant 0 : i32
    return %c0_i32, %c0_i32_0 : i32, i32
  }
  func.func @transform_17(%arg0: i32) -> (i32, i32) {
    %c0_i32 = arith.constant 0 : i32
    %c0_i32_0 = arith.constant 0 : i32
    return %arg0, %c0_i32 : i32, i32
  }
  func.func @transform_18(%arg0: i32) -> (i32, i32) {
    %c0_i32 = arith.constant 0 : i32
    %c0_i32_0 = arith.constant 0 : i32
    return %arg0, %c0_i32 : i32, i32
  }
}

</mosaic_0001>

<llo_original>
// kernel: tpu_custom_call.1
$region0: #{tpu_custom_call.1}
  #allocation0 [shape = 'u32[]', space=smem, size = 0x4, offset = 0x4, fixed_abs, tag = 'smem constant byte address 0x4 - core index']
  #allocation1 [shape = 'u32[72,128]{1,0:T(1,128)}', space=vmem, size = 0x9000, scoped, tag = 'internal scratch']
  %s0 = inlined_call_operand.vmem [shape: f32[16,32], index: 0, kind: input, shape index: {}]
  %s1 = inlined_call_operand.vmem [shape: bf16[32,96], index: 1, kind: input, shape index: {}]
  %s2 = inlined_call_operand.vmem [shape: f32[1,96], index: 2, kind: input, shape index: {}]
  %s3 = inlined_call_operand.vmem [shape: bf16[32,32], index: 3, kind: input, shape index: {}]
  %s4 = inlined_call_operand.vmem [shape: f32[1,32], index: 4, kind: input, shape index: {}]
  %s5 = inlined_call_operand.vmem [shape: f32[1,32], index: 5, kind: input, shape index: {}]
  %s6 = inlined_call_operand.vmem [shape: f32[1,32], index: 6, kind: input, shape index: {}]
  %s7 = inlined_call_operand.vmem [shape: bf16[32,128], index: 7, kind: input, shape index: {}]
  %s8 = inlined_call_operand.vmem [shape: f32[1,128], index: 8, kind: input, shape index: {}]
  %s9 = inlined_call_operand.vmem [shape: bf16[128,32], index: 9, kind: input, shape index: {}]
  %s10 = inlined_call_operand.vmem [shape: f32[1,32], index: 10, kind: input, shape index: {}]
  %s11 = inlined_call_operand.vmem [shape: f32[1,32], index: 11, kind: input, shape index: {}]
  %s12 = inlined_call_operand.vmem [shape: f32[1,32], index: 12, kind: input, shape index: {}]
  %s13 = inlined_call_operand.vmem [shape: bf16[32,128], index: 13, kind: input, shape index: {}]
  %s14 = inlined_call_operand.vmem [shape: f32[1,128], index: 14, kind: input, shape index: {}]
  %s15 = inlined_call_operand.hbm [shape: bf16[32,128], index: 15, kind: input, shape index: {}]
  %s16 = inlined_call_operand.vmem [shape: f32[1,128], index: 16, kind: input, shape index: {}]
  %s17 = inlined_call_operand.hbm [shape: f32[16,128], index: 17, kind: output, shape index: {0}]
  %s18 = inlined_call_operand.hbm [shape: f32[16,128], index: 18, kind: output, shape index: {1}]
  %19 = xla_tuple %s17, %s18
  %s20 = sld [smem:[#allocation0]]
  $region90: #{tpu_custom_call.1} parent=0
    _
  %s22 = ssub.s32 1, %s20
  %s23 = scalar_select 0, %s22, %s20
  $region1: #{tpu_custom_call.1} parent=0
    #allocation2 [shape = 'u8[8192]{0}', space=vmem, size = 0x2000, scoped, tag = 'input window, operand 15, single buffered']
    #allocation3 [shape = 's32[1]{0}', space=sflag, size = 0x4, scoped, tag = 'scoped memory for tpu_custom_call.1']
    #allocation4 [shape = 's32[1]{0}', space=sflag, size = 0x4, scoped, tag = 'scoped memory for tpu_custom_call.1']
    #allocation5 [shape = 'u8[8192]{0}', space=vmem, size = 0x2000, scoped, tag = 'output window, operand 0, single buffered']
    #allocation6 [shape = 'u8[8192]{0}', space=vmem, size = 0x2000, scoped, tag = 'output window, operand 1, single buffered']
    #allocation7 [shape = 's32[1]{0}', space=sflag, size = 0x4, scoped, tag = 'scoped memory for tpu_custom_call.1']
    %24 = vsyncpa [#allocation3], 0
    %25 = vsyncpa [#allocation4], 0
    %26 = vsyncpa [#allocation7], 0
    // Predicated region
    $region2: #{tpu_custom_call.1} parent=1 // pred_check
      _
    $region3: #{tpu_custom_call.1} parent=1 // pred_check_branch
      %28 = sbr.rel (0) target = $region5
    $region4: #{tpu_custom_call.1} parent=1 // pred_region
      _
    $region5: #{tpu_custom_call.1} parent=1 // pred_fallthru
      _
    // Predicated region
    $region6: #{tpu_custom_call.1} parent=1 // pred_check
      _
    $region7: #{tpu_custom_call.1} parent=1 // pred_check_branch
      %30 = sbr.rel (0) target = $region9
    $region8: #{tpu_custom_call.1} parent=1 // pred_region
      _
    $region9: #{tpu_custom_call.1} parent=1 // pred_fallthru
      _
    // Predicated region
    $region10: #{tpu_custom_call.1} parent=1 // pred_check
      _
    $region11: #{tpu_custom_call.1} parent=1 // pred_check_branch
      %32 = sbr.rel (0) target = $region13
    $region12: #{tpu_custom_call.1} parent=1 // pred_region
      _
    $region13: #{tpu_custom_call.1} parent=1 // pred_fallthru
      _
    // Predicated region
    $region14: #{tpu_custom_call.1} parent=1 // pred_check
      _
    $region15: #{tpu_custom_call.1} parent=1 // pred_check_branch
      %34 = sbr.rel (0) target = $region17
    $region16: #{tpu_custom_call.1} parent=1 // pred_region
      _
    $region17: #{tpu_custom_call.1} parent=1 // pred_fallthru
      _
    // Predicated region
    $region18: #{tpu_custom_call.1} parent=1 // pred_check
      _
    $region19: #{tpu_custom_call.1} parent=1 // pred_check_branch
      %36 = sbr.rel (0) target = $region21
    $region20: #{tpu_custom_call.1} parent=1 // pred_region
      _
    $region21: #{tpu_custom_call.1} parent=1 // pred_fallthru
      _
    // Predicated region
    $region22: #{tpu_custom_call.1} parent=1 // pred_check
      _
    $region23: #{tpu_custom_call.1} parent=1 // pred_check_branch
      %38 = sbr.rel (0) target = $region25
    $region24: #{tpu_custom_call.1} parent=1 // pred_region
      _
    $region25: #{tpu_custom_call.1} parent=1 // pred_fallthru
      _
    // Predicated region
    $region26: #{tpu_custom_call.1} parent=1 // pred_check
      _
    $region27: #{tpu_custom_call.1} parent=1 // pred_check_branch
      %40 = sbr.rel (0) target = $region29
    $region28: #{tpu_custom_call.1} parent=1 // pred_region
      _
    $region29: #{tpu_custom_call.1} parent=1 // pred_fallthru
      _
    // Predicated region
    $region30: #{tpu_custom_call.1} parent=1 // pred_check
      _
    $region31: #{tpu_custom_call.1} parent=1 // pred_check_branch
      %42 = sbr.rel (0) target = $region33
    $region32: #{tpu_custom_call.1} parent=1 // pred_region
      _
    $region33: #{tpu_custom_call.1} parent=1 // pred_fallthru
      _
    // Predicated region
    $region34: #{tpu_custom_call.1} parent=1 // pred_check
      _
    $region35: #{tpu_custom_call.1} parent=1 // pred_check_branch
      %44 = sbr.rel (0) target = $region37
    $region36: #{tpu_custom_call.1} parent=1 // pred_region
      _
    $region37: #{tpu_custom_call.1} parent=1 // pred_fallthru
      _
    // Predicated region
    $region38: #{tpu_custom_call.1} parent=1 // pred_check
      _
    $region39: #{tpu_custom_call.1} parent=1 // pred_check_branch
      %46 = sbr.rel (0) target = $region41
    $region40: #{tpu_custom_call.1} parent=1 // pred_region
      _
    $region41: #{tpu_custom_call.1} parent=1 // pred_fallthru
      _
    // Predicated region
    $region42: #{tpu_custom_call.1} parent=1 // pred_check
      _
    $region43: #{tpu_custom_call.1} parent=1 // pred_check_branch
      %48 = sbr.rel (0) target = $region45
    $region44: #{tpu_custom_call.1} parent=1 // pred_region
      _
    $region45: #{tpu_custom_call.1} parent=1 // pred_fallthru
      _
    // Predicated region
    $region46: #{tpu_custom_call.1} parent=1 // pred_check
      _
    $region47: #{tpu_custom_call.1} parent=1 // pred_check_branch
      %50 = sbr.rel (0) target = $region49
    $region48: #{tpu_custom_call.1} parent=1 // pred_region
      _
    $region49: #{tpu_custom_call.1} parent=1 // pred_fallthru
      _
    // Predicated region
    $region50: #{tpu_custom_call.1} parent=1 // pred_check
      _
    $region51: #{tpu_custom_call.1} parent=1 // pred_check_branch
      %52 = sbr.rel (0) target = $region53
    $region52: #{tpu_custom_call.1} parent=1 // pred_region
      _
    $region53: #{tpu_custom_call.1} parent=1 // pred_fallthru
      _
    // Predicated region
    $region54: #{tpu_custom_call.1} parent=1 // pred_check
      _
    $region55: #{tpu_custom_call.1} parent=1 // pred_check_branch
      %54 = sbr.rel (0) target = $region57
    $region56: #{tpu_custom_call.1} parent=1 // pred_region
      _
    $region57: #{tpu_custom_call.1} parent=1 // pred_fallthru
      _
    // Predicated region
    $region58: #{tpu_custom_call.1} parent=1 // pred_check
      _
    $region59: #{tpu_custom_call.1} parent=1 // pred_check_branch
      %56 = sbr.rel (0) target = $region61
    $region60: #{tpu_custom_call.1} parent=1 // pred_region
      _
    $region61: #{tpu_custom_call.1} parent=1 // pred_fallthru
      _
    // Predicated region
    $region62: #{tpu_custom_call.1} parent=1 // pred_check
      _
    $region63: #{tpu_custom_call.1} parent=1 // pred_check_branch
      %58 = sbr.rel (0) target = $region65
    $region64: #{tpu_custom_call.1} parent=1 // pred_region
      %60 = vsyncadd [#allocation3], 0
      %s61 = sshll.u32 %s15, 4
      %s62 = int_to_ptr.hbm [resolvable:$true] %s61
      %s63 = sshll.u32 [#allocation2], 4
      %s64 = int_to_ptr.vmem [resolvable:$true] %s63
      %69 = dma.hbm_to_vmem [thread:$0]  %s62, 256, %s64, [#allocation3], 64, 64, 4
    $region65: #{tpu_custom_call.1} parent=1 // pred_fallthru
      _
    // Predicated region
    $region66: #{tpu_custom_call.1} parent=1 // pred_check
      _
    $region67: #{tpu_custom_call.1} parent=1 // pred_check_branch
      %71 = sbr.rel (0) target = $region69
    $region68: #{tpu_custom_call.1} parent=1 // pred_region
      _
    $region69: #{tpu_custom_call.1} parent=1 // pred_fallthru
      _
    // Predicated region
    $region70: #{tpu_custom_call.1} parent=1 // pred_check
      _
    $region71: #{tpu_custom_call.1} parent=1 // pred_check_branch
      %73 = sbr.rel (0) target = $region73
    $region72: #{tpu_custom_call.1} parent=1 // pred_region
      %75 = dma.done [#allocation3], 256
    $region73: #{tpu_custom_call.1} parent=1 // pred_fallthru
      _
    %v77 = vld [vmem:[%s0] sm:$0xff]
    %v78 = vld [vmem:[%s0 + $0x8] sm:$0xff]
    %v79 = vpack.c.bf16 %v78, %v77
    %v80 = vld [vmem:[%s1] sm:$0xf]
    %v81 = vld [vmem:[%s1 + $0x4] sm:$0xf]
    %v82 = vld [vmem:[%s1 + $0x8] sm:$0xf]
    %v83 = vld [vmem:[%s1 + $0xc] sm:$0xf]
    %v84 = vld [vmem:[%s2] sm:$0x1]
    %v86 = vperm.slane %v84, 0
    %v92 = vunpack.c.l.b16 %v80
    %v93 = vunpack.c.l.b16 %v81
    %v94 = vunpack.c.l.b16 %v82
    %v95 = vunpack.c.l.b16 %v83
    %v96 = vpack.c.b16 %v93, %v92
    %v97 = vpack.c.b16 %v95, %v94
    %vm100 = vcmask 261120
    %v102 = vsel %vm100, %v79, 0
    %104 = vmatpush.bf16.msra.mxu0 0
    %105 = vmatpush.bf16.msra.mxu0 0
    %106 = vmatpush.bf16.msra.mxu0 0
    %107 = vmatpush.bf16.msra.mxu0 0
    %108 = vmatpush.bf16.msra.mxu0 0
    %109 = vmatpush.bf16.msra.mxu0 0
    %110 = vmatpush.bf16.msra.mxu0 %v97
    %111 = vmatpush.bf16.msra.mxu0 %v96
    %112 = vmatmul.bf16.gmra.mxu0 %v102
    %v113 = vpop.f32.mrf.mxu0
    %v114 = vadd.f32 %v86, %v113
    %v115 = vpop.f32.mrf.mxu0
    %v116 = vadd.f32 %v86, %v115
    %117 = vdwg.mxu0
    %v118 = vpack.c.bf16 %v114, %v114
    %v119 = vpack.c.bf16 %v116, %v116
    %v120 = vld [vmem:[%s3] sm:$0xf]
    %v121 = vld [vmem:[%s3 + $0x4] sm:$0xf]
    %v122 = vld [vmem:[%s3 + $0x8] sm:$0xf]
    %v123 = vld [vmem:[%s3 + $0xc] sm:$0xf]
    %v125 = vunpack.c.l.b16 %v118
    %v126 = vpack.c.b16 %v125, %v125
    %127 = vrot.lane.b32.xlu0 %v126, 96
    %v128 = vpop.permute.xlu0 %127
    %vm129 = vcmask 64512
    %v131 = vsel %vm129, %v118, 0
    %v134 = vsel %vm129, %v128, 0
    %136 = vmatpush.bf16.xpose.msra.mxu0 0
    %137 = vmatpush.bf16.xpose.msra.mxu0 0
    %138 = vmatpush.bf16.xpose.msra.mxu0 0
    %139 = vmatpush.bf16.xpose.msra.mxu0 0
    %140 = vmatpush.bf16.xpose.msra.mxu0 0
    %141 = vmatpush.bf16.xpose.msra.mxu0 0
    %142 = vmatpush.bf16.xpose.msra.mxu0 0
    %143 = vmatpush.bf16.xpose.msra.mxu0 %v134
    %144 = vmatmul.bf16.gmra.mxu0 %v131
    %v145 = vpop.f32.mrf.mxu0
    %v146 = vadd.f32 0.0, %v145
    %v147 = vpop.f32.mrf.mxu0
    %148 = vdwg.mxu0
    %v149 = vmul.f32 %v146, 0.35355338
    %v150 = vsel %vm129, %v149, -inf
    %151 = vmax.xlane.f32.xlu0 %v150
    %v152 = vpop.xlane.xlu0 %151
    %v153 = vsub.f32 %v149, %v152
    %v154 = vmul.f32 %v153, 1.442695
    %v155 = vpow.pop %v154
    %v156 = vsel %vm129, %v155, 0.0
    %157 = vadd.xlane.f32.xlu0 %v156
    %v158 = vpop.xlane.xlu0 %157
    %v159 = vrcp.pop %v158
    %v160 = vmul.f32 %v155, %v159
    %v161 = vpack.c.bf16 %v160, %v160
    %162 = vrot.lane.b32.xlu0 %v126, 64
    %v163 = vpop.permute.xlu0 %162
    %v165 = vsel %vm129, %v161, 0
    %vm167 = vcmask 1043456
    %v169 = vsel %vm167, %v163, 0
    %171 = vmatpush.bf16.msra.mxu0 0
    %172 = vmatpush.bf16.msra.mxu0 0
    %173 = vmatpush.bf16.msra.mxu0 0
    %174 = vmatpush.bf16.msra.mxu0 0
    %175 = vmatpush.bf16.msra.mxu0 0
    %176 = vmatpush.bf16.msra.mxu0 0
    %177 = vmatpush.bf16.msra.mxu0 0
    %178 = vmatpush.bf16.msra.mxu0 %v169
    %179 = vmatmul.bf16.gmra.mxu0 %v165
    %v180 = vpop.f32.mrf.mxu0
    %v181 = vadd.f32 0.0, %v180
    %v182 = vpop.f32.mrf.mxu0
    %183 = vdwg.mxu0
    %v184 = vpack.c.bf16 %v181, %v181
    %185 = vrot.lane.b32.xlu0 %v126, 120
    %v186 = vpop.permute.xlu0 %185
    %187 = vrot.lane.b32.xlu0 %v126, 88
    %v188 = vpop.permute.xlu0 %187
    %v190 = vsel %vm129, %v186, 0
    %v193 = vsel %vm129, %v188, 0
    %195 = vmatpush.bf16.xpose.msra.mxu0 0
    %196 = vmatpush.bf16.xpose.msra.mxu0 0
    %197 = vmatpush.bf16.xpose.msra.mxu0 0
    %198 = vmatpush.bf16.xpose.msra.mxu0 0
    %199 = vmatpush.bf16.xpose.msra.mxu0 0
    %200 = vmatpush.bf16.xpose.msra.mxu0 0
    %201 = vmatpush.bf16.xpose.msra.mxu0 0
    %202 = vmatpush.bf16.xpose.msra.mxu0 %v193
    %203 = vmatmul.bf16.gmra.mxu0 %v190
    %v204 = vpop.f32.mrf.mxu0
    %v205 = vadd.f32 0.0, %v204
    %v206 = vpop.f32.mrf.mxu0
    %207 = vdwg.mxu0
    %v208 = vmul.f32 %v205, 0.35355338
    %v209 = vsel %vm129, %v208, -inf
    %210 = vmax.xlane.f32.xlu0 %v209
    %v211 = vpop.xlane.xlu0 %210
    %v212 = vsub.f32 %v208, %v211
    %v213 = vmul.f32 %v212, 1.442695
    %v214 = vpow.pop %v213
    %v215 = vsel %vm129, %v214, 0.0
    %216 = vadd.xlane.f32.xlu0 %v215
    %v217 = vpop.xlane.xlu0 %216
    %v218 = vrcp.pop %v217
    %v219 = vmul.f32 %v214, %v218
    %v220 = vpack.c.bf16 %v219, %v219
    %221 = vrot.lane.b32.xlu0 %v126, 56
    %v222 = vpop.permute.xlu0 %221
    %v224 = vsel %vm129, %v220, 0
    %v227 = vsel %vm167, %v222, 0
    %229 = vmatpush.bf16.msra.mxu0 0
    %230 = vmatpush.bf16.msra.mxu0 0
    %231 = vmatpush.bf16.msra.mxu0 0
    %232 = vmatpush.bf16.msra.mxu0 0
    %233 = vmatpush.bf16.msra.mxu0 0
    %234 = vmatpush.bf16.msra.mxu0 0
    %235 = vmatpush.bf16.msra.mxu0 0
    %236 = vmatpush.bf16.msra.mxu0 %v227
    %237 = vmatmul.bf16.gmra.mxu0 %v224
    %v238 = vpop.f32.mrf.mxu0
    %v239 = vadd.f32 0.0, %v238
    %v240 = vpop.f32.mrf.mxu0
    %241 = vdwg.mxu0
    %v242 = vpack.c.bf16 %v239, %v239
    %v244 = vsel %vm129, %v242, 0
    %v247 = vsel %vm167, %v121, 0
    %249 = vmatpush.bf16.msra.mxu0 0
    %250 = vmatpush.bf16.msra.mxu0 0
    %251 = vmatpush.bf16.msra.mxu0 0
    %252 = vmatpush.bf16.msra.mxu0 0
    %253 = vmatpush.bf16.msra.mxu0 0
    %254 = vmatpush.bf16.msra.mxu0 0
    %255 = vmatpush.bf16.msra.mxu0 0
    %256 = vmatpush.bf16.msra.mxu0 %v247
    %257 = vmatmul.bf16.gmra.mxu0 %v244
    %v258 = vpop.f32.mrf.mxu0
    %v259 = vadd.f32 0.0, %v258
    %v260 = vpop.f32.mrf.mxu0
    %261 = vdwg.mxu0
    %v263 = vsel %vm129, %v184, 0
    %v266 = vsel %vm167, %v120, 0
    %268 = vmatpush.bf16.msra.mxu0 0
    %269 = vmatpush.bf16.msra.mxu0 0
    %270 = vmatpush.bf16.msra.mxu0 0
    %271 = vmatpush.bf16.msra.mxu0 0
    %272 = vmatpush.bf16.msra.mxu0 0
    %273 = vmatpush.bf16.msra.mxu0 0
    %274 = vmatpush.bf16.msra.mxu0 0
    %275 = vmatpush.bf16.msra.mxu0 %v266
    %276 = vmatmul.bf16.gmra.mxu0 %v263
    %v277 = vpop.f32.mrf.mxu0
    %v278 = vadd.f32 %v259, %v277
    %v279 = vpop.f32.mrf.mxu0
    %280 = vdwg.mxu0
    %281 = vrot.lane.b32.xlu0 %v126, 112
    %v282 = vpop.permute.xlu0 %281
    %283 = vrot.lane.b32.xlu0 %v126, 80
    %v284 = vpop.permute.xlu0 %283
    %v286 = vsel %vm129, %v282, 0
    %v289 = vsel %vm129, %v284, 0
    %291 = vmatpush.bf16.xpose.msra.mxu0 0
    %292 = vmatpush.bf16.xpose.msra.mxu0 0
    %293 = vmatpush.bf16.xpose.msra.mxu0 0
    %294 = vmatpush.bf16.xpose.msra.mxu0 0
    %295 = vmatpush.bf16.xpose.msra.mxu0 0
    %296 = vmatpush.bf16.xpose.msra.mxu0 0
    %297 = vmatpush.bf16.xpose.msra.mxu0 0
    %298 = vmatpush.bf16.xpose.msra.mxu0 %v289
    %299 = vmatmul.bf16.gmra.mxu0 %v286
    %v300 = vpop.f32.mrf.mxu0
    %v301 = vadd.f32 0.0, %v300
    %v302 = vpop.f32.mrf.mxu0
    %303 = vdwg.mxu0
    %v304 = vmul.f32 %v301, 0.35355338
    %v305 = vsel %vm129, %v304, -inf
    %306 = vmax.xlane.f32.xlu0 %v305
    %v307 = vpop.xlane.xlu0 %306
    %v308 = vsub.f32 %v304, %v307
    %v309 = vmul.f32 %v308, 1.442695
    %v310 = vpow.pop %v309
    %v311 = vsel %vm129, %v310, 0.0
    %312 = vadd.xlane.f32.xlu0 %v311
    %v313 = vpop.xlane.xlu0 %312
    %v314 = vrcp.pop %v313
    %v315 = vmul.f32 %v310, %v314
    %v316 = vpack.c.bf16 %v315, %v315
    %317 = vrot.lane.b32.xlu0 %v126, 48
    %v318 = vpop.permute.xlu0 %317
    %v320 = vsel %vm129, %v316, 0
    %v323 = vsel %vm167, %v318, 0
    %325 = vmatpush.bf16.msra.mxu0 0
    %326 = vmatpush.bf16.msra.mxu0 0
    %327 = vmatpush.bf16.msra.mxu0 0
    %328 = vmatpush.bf16.msra.mxu0 0
    %329 = vmatpush.bf16.msra.mxu0 0
    %330 = vmatpush.bf16.msra.mxu0 0
    %331 = vmatpush.bf16.msra.mxu0 0
    %332 = vmatpush.bf16.msra.mxu0 %v323
    %333 = vmatmul.bf16.gmra.mxu0 %v320
    %v334 = vpop.f32.mrf.mxu0
    %v335 = vadd.f32 0.0, %v334
    %v336 = vpop.f32.mrf.mxu0
    %337 = vdwg.mxu0
    %v338 = vpack.c.bf16 %v335, %v335
    %v340 = vsel %vm129, %v338, 0
    %v343 = vsel %vm167, %v122, 0
    %345 = vmatpush.bf16.msra.mxu0 0
    %346 = vmatpush.bf16.msra.mxu0 0
    %347 = vmatpush.bf16.msra.mxu0 0
    %348 = vmatpush.bf16.msra.mxu0 0
    %349 = vmatpush.bf16.msra.mxu0 0
    %350 = vmatpush.bf16.msra.mxu0 0
    %351 = vmatpush.bf16.msra.mxu0 0
    %352 = vmatpush.bf16.msra.mxu0 %v343
    %353 = vmatmul.bf16.gmra.mxu0 %v340
    %v354 = vpop.f32.mrf.mxu0
    %v355 = vadd.f32 0.0, %v354
    %v356 = vpop.f32.mrf.mxu0
    %357 = vdwg.mxu0
    %v358 = vadd.f32 %v278, %v355
    %359 = vrot.lane.b32.xlu0 %v126, 104
    %v360 = vpop.permute.xlu0 %359
    %361 = vrot.lane.b32.xlu0 %v126, 72
    %v362 = vpop.permute.xlu0 %361
    %v364 = vsel %vm129, %v360, 0
    %v367 = vsel %vm129, %v362, 0
    %369 = vmatpush.bf16.xpose.msra.mxu0 0
    %370 = vmatpush.bf16.xpose.msra.mxu0 0
    %371 = vmatpush.bf16.xpose.msra.mxu0 0
    %372 = vmatpush.bf16.xpose.msra.mxu0 0
    %373 = vmatpush.bf16.xpose.msra.mxu0 0
    %374 = vmatpush.bf16.xpose.msra.mxu0 0
    %375 = vmatpush.bf16.xpose.msra.mxu0 0
    %376 = vmatpush.bf16.xpose.msra.mxu0 %v367
    %377 = vmatmul.bf16.gmra.mxu0 %v364
    %v378 = vpop.f32.mrf.mxu0
    %v379 = vadd.f32 0.0, %v378
    %v380 = vpop.f32.mrf.mxu0
    %381 = vdwg.mxu0
    %v382 = vmul.f32 %v379, 0.35355338
    %v383 = vsel %vm129, %v382, -inf
    %384 = vmax.xlane.f32.xlu0 %v383
    %v385 = vpop.xlane.xlu0 %384
    %v386 = vsub.f32 %v382, %v385
    %v387 = vmul.f32 %v386, 1.442695
    %v388 = vpow.pop %v387
    %v389 = vsel %vm129, %v388, 0.0
    %390 = vadd.xlane.f32.xlu0 %v389
    %v391 = vpop.xlane.xlu0 %390
    %v392 = vrcp.pop %v391
    %v393 = vmul.f32 %v388, %v392
    %v394 = vpack.c.bf16 %v393, %v393
    %395 = vrot.lane.b32.xlu0 %v126, 40
    %v396 = vpop.permute.xlu0 %395
    %v398 = vsel %vm129, %v394, 0
    %v401 = vsel %vm167, %v396, 0
    %403 = vmatpush.bf16.msra.mxu0 0
    %404 = vmatpush.bf16.msra.mxu0 0
    %405 = vmatpush.bf16.msra.mxu0 0
    %406 = vmatpush.bf16.msra.mxu0 0
    %407 = vmatpush.bf16.msra.mxu0 0
    %408 = vmatpush.bf16.msra.mxu0 0
    %409 = vmatpush.bf16.msra.mxu0 0
    %410 = vmatpush.bf16.msra.mxu0 %v401
    %411 = vmatmul.bf16.gmra.mxu0 %v398
    %v412 = vpop.f32.mrf.mxu0
    %v413 = vadd.f32 0.0, %v412
    %v414 = vpop.f32.mrf.mxu0
    %415 = vdwg.mxu0
    %v416 = vpack.c.bf16 %v413, %v413
    %v418 = vsel %vm129, %v416, 0
    %v421 = vsel %vm167, %v123, 0
    %423 = vmatpush.bf16.msra.mxu0 0
    %424 = vmatpush.bf16.msra.mxu0 0
    %425 = vmatpush.bf16.msra.mxu0 0
    %426 = vmatpush.bf16.msra.mxu0 0
    %427 = vmatpush.bf16.msra.mxu0 0
    %428 = vmatpush.bf16.msra.mxu0 0
    %429 = vmatpush.bf16.msra.mxu0 0
    %430 = vmatpush.bf16.msra.mxu0 %v421
    %431 = vmatmul.bf16.gmra.mxu0 %v418
    %v432 = vpop.f32.mrf.mxu0
    %v433 = vadd.f32 0.0, %v432
    %v434 = vpop.f32.mrf.mxu0
    %435 = vdwg.mxu0
    %v436 = vadd.f32 %v358, %v433
    %v438 = vunpack.c.l.b16 %v119
    %v439 = vpack.c.b16 %v438, %v438
    %440 = vrot.lane.b32.xlu0 %v439, 96
    %v441 = vpop.permute.xlu0 %440
    %v443 = vsel %vm129, %v119, 0
    %v446 = vsel %vm129, %v441, 0
    %448 = vmatpush.bf16.xpose.msra.mxu0 0
    %449 = vmatpush.bf16.xpose.msra.mxu0 0
    %450 = vmatpush.bf16.xpose.msra.mxu0 0
    %451 = vmatpush.bf16.xpose.msra.mxu0 0
    %452 = vmatpush.bf16.xpose.msra.mxu0 0
    %453 = vmatpush.bf16.xpose.msra.mxu0 0
    %454 = vmatpush.bf16.xpose.msra.mxu0 0
    %455 = vmatpush.bf16.xpose.msra.mxu0 %v446
    %456 = vmatmul.bf16.gmra.mxu0 %v443
    %v457 = vpop.f32.mrf.mxu0
    %v458 = vadd.f32 0.0, %v457
    %v459 = vpop.f32.mrf.mxu0
    %460 = vdwg.mxu0
    %v461 = vmul.f32 %v458, 0.35355338
    %v462 = vsel %vm129, %v461, -inf
    %463 = vmax.xlane.f32.xlu0 %v462
    %v464 = vpop.xlane.xlu0 %463
    %v465 = vsub.f32 %v461, %v464
    %v466 = vmul.f32 %v465, 1.442695
    %v467 = vpow.pop %v466
    %v468 = vsel %vm129, %v467, 0.0
    %469 = vadd.xlane.f32.xlu0 %v468
    %v470 = vpop.xlane.xlu0 %469
    %v471 = vrcp.pop %v470
    %v472 = vmul.f32 %v467, %v471
    %v473 = vpack.c.bf16 %v472, %v472
    %474 = vrot.lane.b32.xlu0 %v439, 64
    %v475 = vpop.permute.xlu0 %474
    %v477 = vsel %vm129, %v473, 0
    %v480 = vsel %vm167, %v475, 0
    %482 = vmatpush.bf16.msra.mxu0 0
    %483 = vmatpush.bf16.msra.mxu0 0
    %484 = vmatpush.bf16.msra.mxu0 0
    %485 = vmatpush.bf16.msra.mxu0 0
    %486 = vmatpush.bf16.msra.mxu0 0
    %487 = vmatpush.bf16.msra.mxu0 0
    %488 = vmatpush.bf16.msra.mxu0 0
    %489 = vmatpush.bf16.msra.mxu0 %v480
    %490 = vmatmul.bf16.gmra.mxu0 %v477
    %v491 = vpop.f32.mrf.mxu0
    %v492 = vadd.f32 0.0, %v491
    %v493 = vpop.f32.mrf.mxu0
    %494 = vdwg.mxu0
    %v495 = vpack.c.bf16 %v492, %v492
    %496 = vrot.lane.b32.xlu0 %v439, 120
    %v497 = vpop.permute.xlu0 %496
    %498 = vrot.lane.b32.xlu0 %v439, 88
    %v499 = vpop.permute.xlu0 %498
    %v501 = vsel %vm129, %v497, 0
    %v504 = vsel %vm129, %v499, 0
    %506 = vmatpush.bf16.xpose.msra.mxu0 0
    %507 = vmatpush.bf16.xpose.msra.mxu0 0
    %508 = vmatpush.bf16.xpose.msra.mxu0 0
    %509 = vmatpush.bf16.xpose.msra.mxu0 0
    %510 = vmatpush.bf16.xpose.msra.mxu0 0
    %511 = vmatpush.bf16.xpose.msra.mxu0 0
    %512 = vmatpush.bf16.xpose.msra.mxu0 0
    %513 = vmatpush.bf16.xpose.msra.mxu0 %v504
    %514 = vmatmul.bf16.gmra.mxu0 %v501
    %v515 = vpop.f32.mrf.mxu0
    %v516 = vadd.f32 0.0, %v515
    %v517 = vpop.f32.mrf.mxu0
    %518 = vdwg.mxu0
    %v519 = vmul.f32 %v516, 0.35355338
    %v520 = vsel %vm129, %v519, -inf
    %521 = vmax.xlane.f32.xlu0 %v520
    %v522 = vpop.xlane.xlu0 %521
    %v523 = vsub.f32 %v519, %v522
    %v524 = vmul.f32 %v523, 1.442695
    %v525 = vpow.pop %v524
    %v526 = vsel %vm129, %v525, 0.0
    %527 = vadd.xlane.f32.xlu0 %v526
    %v528 = vpop.xlane.xlu0 %527
    %v529 = vrcp.pop %v528
    %v530 = vmul.f32 %v525, %v529
    %v531 = vpack.c.bf16 %v530, %v530
    %532 = vrot.lane.b32.xlu0 %v439, 56
    %v533 = vpop.permute.xlu0 %532
    %v535 = vsel %vm129, %v531, 0
    %v538 = vsel %vm167, %v533, 0
    %540 = vmatpush.bf16.msra.mxu0 0
    %541 = vmatpush.bf16.msra.mxu0 0
    %542 = vmatpush.bf16.msra.mxu0 0
    %543 = vmatpush.bf16.msra.mxu0 0
    %544 = vmatpush.bf16.msra.mxu0 0
    %545 = vmatpush.bf16.msra.mxu0 0
    %546 = vmatpush.bf16.msra.mxu0 0
    %547 = vmatpush.bf16.msra.mxu0 %v538
    %548 = vmatmul.bf16.gmra.mxu0 %v535
    %v549 = vpop.f32.mrf.mxu0
    %v550 = vadd.f32 0.0, %v549
    %v551 = vpop.f32.mrf.mxu0
    %552 = vdwg.mxu0
    %v553 = vpack.c.bf16 %v550, %v550
    %v555 = vsel %vm129, %v553, 0
    %557 = vmatpush.bf16.msra.mxu0 0
    %558 = vmatpush.bf16.msra.mxu0 0
    %559 = vmatpush.bf16.msra.mxu0 0
    %560 = vmatpush.bf16.msra.mxu0 0
    %561 = vmatpush.bf16.msra.mxu0 0
    %562 = vmatpush.bf16.msra.mxu0 0
    %563 = vmatpush.bf16.msra.mxu0 0
    %564 = vmatpush.bf16.msra.mxu0 %v247
    %565 = vmatmul.bf16.gmra.mxu0 %v555
    %v566 = vpop.f32.mrf.mxu0
    %v567 = vadd.f32 0.0, %v566
    %v568 = vpop.f32.mrf.mxu0
    %569 = vdwg.mxu0
    %v571 = vsel %vm129, %v495, 0
    %573 = vmatpush.bf16.msra.mxu0 0
    %574 = vmatpush.bf16.msra.mxu0 0
    %575 = vmatpush.bf16.msra.mxu0 0
    %576 = vmatpush.bf16.msra.mxu0 0
    %577 = vmatpush.bf16.msra.mxu0 0
    %578 = vmatpush.bf16.msra.mxu0 0
    %579 = vmatpush.bf16.msra.mxu0 0
    %580 = vmatpush.bf16.msra.mxu0 %v266
    %581 = vmatmul.bf16.gmra.mxu0 %v571
    %v582 = vpop.f32.mrf.mxu0
    %v583 = vadd.f32 %v567, %v582
    %v584 = vpop.f32.mrf.mxu0
    %585 = vdwg.mxu0
    %586 = vrot.lane.b32.xlu0 %v439, 112
    %v587 = vpop.permute.xlu0 %586
    %588 = vrot.lane.b32.xlu0 %v439, 80
    %v589 = vpop.permute.xlu0 %588
    %v591 = vsel %vm129, %v587, 0
    %v594 = vsel %vm129, %v589, 0
    %596 = vmatpush.bf16.xpose.msra.mxu0 0
    %597 = vmatpush.bf16.xpose.msra.mxu0 0
    %598 = vmatpush.bf16.xpose.msra.mxu0 0
    %599 = vmatpush.bf16.xpose.msra.mxu0 0
    %600 = vmatpush.bf16.xpose.msra.mxu0 0
    %601 = vmatpush.bf16.xpose.msra.mxu0 0
    %602 = vmatpush.bf16.xpose.msra.mxu0 0
    %603 = vmatpush.bf16.xpose.msra.mxu0 %v594
    %604 = vmatmul.bf16.gmra.mxu0 %v591
    %v605 = vpop.f32.mrf.mxu0
    %v606 = vadd.f32 0.0, %v605
    %v607 = vpop.f32.mrf.mxu0
    %608 = vdwg.mxu0
    %v609 = vmul.f32 %v606, 0.35355338
    %v610 = vsel %vm129, %v609, -inf
    %611 = vmax.xlane.f32.xlu0 %v610
    %v612 = vpop.xlane.xlu0 %611
    %v613 = vsub.f32 %v609, %v612
    %v614 = vmul.f32 %v613, 1.442695
    %v615 = vpow.pop %v614
    %v616 = vsel %vm129, %v615, 0.0
    %617 = vadd.xlane.f32.xlu0 %v616
    %v618 = vpop.xlane.xlu0 %617
    %v619 = vrcp.pop %v618
    %v620 = vmul.f32 %v615, %v619
    %v621 = vpack.c.bf16 %v620, %v620
    %622 = vrot.lane.b32.xlu0 %v439, 48
    %v623 = vpop.permute.xlu0 %622
    %v625 = vsel %vm129, %v621, 0
    %v628 = vsel %vm167, %v623, 0
    %630 = vmatpush.bf16.msra.mxu0 0
    %631 = vmatpush.bf16.msra.mxu0 0
    %632 = vmatpush.bf16.msra.mxu0 0
    %633 = vmatpush.bf16.msra.mxu0 0
    %634 = vmatpush.bf16.msra.mxu0 0
    %635 = vmatpush.bf16.msra.mxu0 0
    %636 = vmatpush.bf16.msra.mxu0 0
    %637 = vmatpush.bf16.msra.mxu0 %v628
    %638 = vmatmul.bf16.gmra.mxu0 %v625
    %v639 = vpop.f32.mrf.mxu0
    %v640 = vadd.f32 0.0, %v639
    %v641 = vpop.f32.mrf.mxu0
    %642 = vdwg.mxu0
    %v643 = vpack.c.bf16 %v640, %v640
    %v645 = vsel %vm129, %v643, 0
    %647 = vmatpush.bf16.msra.mxu0 0
    %648 = vmatpush.bf16.msra.mxu0 0
    %649 = vmatpush.bf16.msra.mxu0 0
    %650 = vmatpush.bf16.msra.mxu0 0
    %651 = vmatpush.bf16.msra.mxu0 0
    %652 = vmatpush.bf16.msra.mxu0 0
    %653 = vmatpush.bf16.msra.mxu0 0
    %654 = vmatpush.bf16.msra.mxu0 %v343
    %655 = vmatmul.bf16.gmra.mxu0 %v645
    %v656 = vpop.f32.mrf.mxu0
    %v657 = vadd.f32 0.0, %v656
    %v658 = vpop.f32.mrf.mxu0
    %659 = vdwg.mxu0
    %v660 = vadd.f32 %v583, %v657
    %661 = vrot.lane.b32.xlu0 %v439, 104
    %v662 = vpop.permute.xlu0 %661
    %663 = vrot.lane.b32.xlu0 %v439, 72
    %v664 = vpop.permute.xlu0 %663
    %v666 = vsel %vm129, %v662, 0
    %v669 = vsel %vm129, %v664, 0
    %671 = vmatpush.bf16.xpose.msra.mxu0 0
    %672 = vmatpush.bf16.xpose.msra.mxu0 0
    %673 = vmatpush.bf16.xpose.msra.mxu0 0
    %674 = vmatpush.bf16.xpose.msra.mxu0 0
    %675 = vmatpush.bf16.xpose.msra.mxu0 0
    %676 = vmatpush.bf16.xpose.msra.mxu0 0
    %677 = vmatpush.bf16.xpose.msra.mxu0 0
    %678 = vmatpush.bf16.xpose.msra.mxu0 %v669
    %679 = vmatmul.bf16.gmra.mxu0 %v666
    %v680 = vpop.f32.mrf.mxu0
    %v681 = vadd.f32 0.0, %v680
    %v682 = vpop.f32.mrf.mxu0
    %683 = vdwg.mxu0
    %v684 = vmul.f32 %v681, 0.35355338
    %v685 = vsel %vm129, %v684, -inf
    %686 = vmax.xlane.f32.xlu0 %v685
    %v687 = vpop.xlane.xlu0 %686
    %v688 = vsub.f32 %v684, %v687
    %v689 = vmul.f32 %v688, 1.442695
    %v690 = vpow.pop %v689
    %v691 = vsel %vm129, %v690, 0.0
    %692 = vadd.xlane.f32.xlu0 %v691
    %v693 = vpop.xlane.xlu0 %692
    %v694 = vrcp.pop %v693
    %v695 = vmul.f32 %v690, %v694
    %v696 = vpack.c.bf16 %v695, %v695
    %697 = vrot.lane.b32.xlu0 %v439, 40
    %v698 = vpop.permute.xlu0 %697
    %v700 = vsel %vm129, %v696, 0
    %v703 = vsel %vm167, %v698, 0
    %705 = vmatpush.bf16.msra.mxu0 0
    %706 = vmatpush.bf16.msra.mxu0 0
    %707 = vmatpush.bf16.msra.mxu0 0
    %708 = vmatpush.bf16.msra.mxu0 0
    %709 = vmatpush.bf16.msra.mxu0 0
    %710 = vmatpush.bf16.msra.mxu0 0
    %711 = vmatpush.bf16.msra.mxu0 0
    %712 = vmatpush.bf16.msra.mxu0 %v703
    %713 = vmatmul.bf16.gmra.mxu0 %v700
    %v714 = vpop.f32.mrf.mxu0
    %v715 = vadd.f32 0.0, %v714
    %v716 = vpop.f32.mrf.mxu0
    %717 = vdwg.mxu0
    %v718 = vpack.c.bf16 %v715, %v715
    %v720 = vsel %vm129, %v718, 0
    %722 = vmatpush.bf16.msra.mxu0 0
    %723 = vmatpush.bf16.msra.mxu0 0
    %724 = vmatpush.bf16.msra.mxu0 0
    %725 = vmatpush.bf16.msra.mxu0 0
    %726 = vmatpush.bf16.msra.mxu0 0
    %727 = vmatpush.bf16.msra.mxu0 0
    %728 = vmatpush.bf16.msra.mxu0 0
    %729 = vmatpush.bf16.msra.mxu0 %v421
    %730 = vmatmul.bf16.gmra.mxu0 %v720
    %v731 = vpop.f32.mrf.mxu0
    %v732 = vadd.f32 0.0, %v731
    %v733 = vpop.f32.mrf.mxu0
    %734 = vdwg.mxu0
    %v735 = vadd.f32 %v660, %v732
    %v736 = vld [vmem:[%s4] sm:$0x1]
    %v738 = vperm.slane %v736, 0
    %v740 = vadd.f32 %v436, %v738
    %v741 = vadd.f32 %v735, %v738
    %v742 = vadd.f32 %v77, %v740
    %v743 = vadd.f32 %v78, %v741
    %v744 = vld [vmem:[%s5] sm:$0x1]
    %v745 = vld [vmem:[%s6] sm:$0x1]
    %v746 = vsel %vm100, %v742, 0.0
    %747 = vadd.xlane.f32.xlu0 %v746
    %v748 = vpop.xlane.xlu0 %747
    %v749 = vsel %vm100, %v743, 0.0
    %750 = vadd.xlane.f32.xlu0 %v749
    %v751 = vpop.xlane.xlu0 %750
    %v752 = vrcp.pop 32.0
    %v753 = vmul.f32 32.0, %v752
    %v754 = vsub.f32 1.0, %v753
    %v755 = vmul.f32 %v752, %v754
    %v756 = vadd.f32 %v752, %v755
    %vm757 = vweird.f32 %v752
    %v758 = vsel %vm757, %v752, %v756
    %v759 = vmul.f32 %v748, %v758
    %v760 = vmul.f32 %v751, %v758
    %v761 = vsub.f32 %v742, %v759
    %v762 = vsub.f32 %v743, %v760
    %v763 = vmul.f32 %v761, %v761
    %v764 = vmul.f32 %v762, %v762
    %v765 = vsel %vm100, %v763, 0.0
    %766 = vadd.xlane.f32.xlu0 %v765
    %v767 = vpop.xlane.xlu0 %766
    %v768 = vsel %vm100, %v764, 0.0
    %769 = vadd.xlane.f32.xlu0 %v768
    %v770 = vpop.xlane.xlu0 %769
    %v771 = vmul.f32 %v767, %v758
    %v772 = vmul.f32 %v770, %v758
    %v773 = vadd.f32 %v771, 1e-12
    %v774 = vadd.f32 %v772, 1e-12
    %v775 = vrsqrt.pop %v773
    %v776 = vmul.f32 %v775, %v773
    %v777 = vmul.f32 %v776, %v775
    %v778 = vmul.f32 0.5, %v777
    %v779 = vsub.f32 1.5, %v778
    %v780 = vmul.f32 %v775, %v779
    %vm781 = vweird.f32 %v773
    %vm782 = vweird.f32 %v775
    %vm783 = vmor %vm781, %vm782
    %v784 = vsel %vm783, %v775, %v780
    %v785 = vrsqrt.pop %v774
    %v786 = vmul.f32 %v785, %v774
    %v787 = vmul.f32 %v786, %v785
    %v788 = vmul.f32 0.5, %v787
    %v789 = vsub.f32 1.5, %v788
    %v790 = vmul.f32 %v785, %v789
    %vm791 = vweird.f32 %v774
    %vm792 = vweird.f32 %v785
    %vm793 = vmor %vm791, %vm792
    %v794 = vsel %vm793, %v785, %v790
    %v795 = vmul.f32 %v761, %v784
    %v796 = vmul.f32 %v762, %v794
    %v798 = vperm.slane %v744, 0
    %v800 = vmul.f32 %v795, %v798
    %v801 = vmul.f32 %v796, %v798
    %v803 = vperm.slane %v745, 0
    %v805 = vadd.f32 %v800, %v803
    %v806 = vadd.f32 %v801, %v803
    %v807 = vpack.c.bf16 %v806, %v805
    %v808 = vld [vmem:[%s7] sm:$0xf]
    %v809 = vld [vmem:[%s7 + $0x4] sm:$0xf]
    %v810 = vld [vmem:[%s7 + $0x8] sm:$0xf]
    %v811 = vld [vmem:[%s7 + $0xc] sm:$0xf]
    %v812 = vld [vmem:[%s8] sm:$0x1]
    %v814 = vperm.slane %v812, 0
    %v820 = vunpack.c.l.b16 %v808
    %v821 = vunpack.c.l.b16 %v809
    %v822 = vunpack.c.l.b16 %v810
    %v823 = vunpack.c.l.b16 %v811
    %v824 = vpack.c.b16 %v821, %v820
    %v825 = vpack.c.b16 %v823, %v822
    %v829 = vsel %vm100, %v807, 0
    %831 = vmatpush.bf16.msra.mxu0 0
    %832 = vmatpush.bf16.msra.mxu0 0
    %833 = vmatpush.bf16.msra.mxu0 0
    %834 = vmatpush.bf16.msra.mxu0 0
    %835 = vmatpush.bf16.msra.mxu0 0
    %836 = vmatpush.bf16.msra.mxu0 0
    %837 = vmatpush.bf16.msra.mxu0 %v825
    %838 = vmatpush.bf16.msra.mxu0 %v824
    %839 = vmatmul.bf16.gmra.mxu0 %v829
    %v840 = vpop.f32.mrf.mxu0
    %v841 = vadd.f32 %v814, %v840
    %v842 = vpop.f32.mrf.mxu0
    %v843 = vadd.f32 %v814, %v842
    %844 = vdwg.mxu0
    %v845 = vmul.f32 %v841, 0.5
    %v846 = vmul.f32 %v843, 0.5
    %v847 = vmul.f32 %v841, 0.044715
    %v848 = vmul.f32 %v843, 0.044715
    %v849 = vmul.f32 %v847, %v841
    %v850 = vmul.f32 %v848, %v843
    %v851 = vmul.f32 %v849, %v841
    %v852 = vmul.f32 %v850, %v843
    %v853 = vadd.f32 %v841, %v851
    %v854 = vadd.f32 %v843, %v852
    %v855 = vmul.f32 %v853, 0.7978846
    %v856 = vmul.f32 %v854, 0.7978846
    %v857 = vtanh.pop %v855
    %v858 = vtanh.pop %v856
    %v859 = vadd.f32 %v857, 1.0
    %v860 = vadd.f32 %v858, 1.0
    %v861 = vmul.f32 %v845, %v859
    %v862 = vmul.f32 %v846, %v860
    %v863 = vpack.c.bf16 %v862, %v861
    %v864 = vld [vmem:[%s9] sm:$0xf]
    %v865 = vld [vmem:[%s9 + $0x4] sm:$0xf]
    %v866 = vld [vmem:[%s9 + $0x8] sm:$0xf]
    %v867 = vld [vmem:[%s9 + $0xc] sm:$0xf]
    %v868 = vld [vmem:[%s9 + $0x10] sm:$0xf]
    %v869 = vld [vmem:[%s9 + $0x14] sm:$0xf]
    %v870 = vld [vmem:[%s9 + $0x18] sm:$0xf]
    %v871 = vld [vmem:[%s9 + $0x1c] sm:$0xf]
    %v872 = vld [vmem:[%s9 + $0x20] sm:$0xf]
    %v873 = vld [vmem:[%s9 + $0x24] sm:$0xf]
    %v874 = vld [vmem:[%s9 + $0x28] sm:$0xf]
    %v875 = vld [vmem:[%s9 + $0x2c] sm:$0xf]
    %v876 = vld [vmem:[%s9 + $0x30] sm:$0xf]
    %v877 = vld [vmem:[%s9 + $0x34] sm:$0xf]
    %v878 = vld [vmem:[%s9 + $0x38] sm:$0xf]
    %v879 = vld [vmem:[%s9 + $0x3c] sm:$0xf]
    %v880 = vld [vmem:[%s10] sm:$0x1]
    %v882 = vperm.slane %v880, 0
    %v900 = vunpack.c.l.b16 %v864
    %v901 = vunpack.c.l.b16 %v865
    %v902 = vunpack.c.l.b16 %v866
    %v903 = vunpack.c.l.b16 %v867
    %v904 = vunpack.c.l.b16 %v868
    %v905 = vunpack.c.l.b16 %v869
    %v906 = vunpack.c.l.b16 %v870
    %v907 = vunpack.c.l.b16 %v871
    %v908 = vunpack.c.l.b16 %v872
    %v909 = vunpack.c.l.b16 %v873
    %v910 = vunpack.c.l.b16 %v874
    %v911 = vunpack.c.l.b16 %v875
    %v912 = vunpack.c.l.b16 %v876
    %v913 = vunpack.c.l.b16 %v877
    %v914 = vunpack.c.l.b16 %v878
    %v915 = vunpack.c.l.b16 %v879
    %v916 = vpack.c.b16 %v901, %v900
    %v917 = vpack.c.b16 %v903, %v902
    %v918 = vpack.c.b16 %v905, %v904
    %v919 = vpack.c.b16 %v907, %v906
    %v920 = vpack.c.b16 %v909, %v908
    %v921 = vpack.c.b16 %v911, %v910
    %v922 = vpack.c.b16 %v913, %v912
    %v923 = vpack.c.b16 %v915, %v914
    %932 = vmatpush.bf16.msra.mxu0 %v923
    %933 = vmatpush.bf16.msra.mxu0 %v922
    %934 = vmatpush.bf16.msra.mxu0 %v921
    %935 = vmatpush.bf16.msra.mxu0 %v920
    %936 = vmatpush.bf16.msra.mxu0 %v919
    %937 = vmatpush.bf16.msra.mxu0 %v918
    %938 = vmatpush.bf16.msra.mxu0 %v917
    %939 = vmatpush.bf16.msra.mxu0 %v916
    %940 = vmatmul.bf16.gmra.mxu0 %v863
    %v941 = vpop.f32.mrf.mxu0
    %v942 = vadd.f32 %v882, %v941
    %v943 = vpop.f32.mrf.mxu0
    %v944 = vadd.f32 %v882, %v943
    %945 = vdwg.mxu0
    %v946 = vadd.f32 %v805, %v942
    %v947 = vadd.f32 %v806, %v944
    %v948 = vld [vmem:[%s11] sm:$0x1]
    %v949 = vld [vmem:[%s12] sm:$0x1]
    %v950 = vsel %vm100, %v946, 0.0
    %951 = vadd.xlane.f32.xlu0 %v950
    %v952 = vpop.xlane.xlu0 %951
    %v953 = vsel %vm100, %v947, 0.0
    %954 = vadd.xlane.f32.xlu0 %v953
    %v955 = vpop.xlane.xlu0 %954
    %v956 = vmul.f32 %v952, %v758
    %v957 = vmul.f32 %v955, %v758
    %v958 = vsub.f32 %v946, %v956
    %v959 = vsub.f32 %v947, %v957
    %v960 = vmul.f32 %v958, %v958
    %v961 = vmul.f32 %v959, %v959
    %v962 = vsel %vm100, %v960, 0.0
    %963 = vadd.xlane.f32.xlu0 %v962
    %v964 = vpop.xlane.xlu0 %963
    %v965 = vsel %vm100, %v961, 0.0
    %966 = vadd.xlane.f32.xlu0 %v965
    %v967 = vpop.xlane.xlu0 %966
    %v968 = vmul.f32 %v964, %v758
    %v969 = vmul.f32 %v967, %v758
    %v970 = vadd.f32 %v968, 1e-12
    %v971 = vadd.f32 %v969, 1e-12
    %v972 = vrsqrt.pop %v970
    %v973 = vmul.f32 %v972, %v970
    %v974 = vmul.f32 %v973, %v972
    %v975 = vmul.f32 0.5, %v974
    %v976 = vsub.f32 1.5, %v975
    %v977 = vmul.f32 %v972, %v976
    %vm978 = vweird.f32 %v970
    %vm979 = vweird.f32 %v972
    %vm980 = vmor %vm978, %vm979
    %v981 = vsel %vm980, %v972, %v977
    %v982 = vrsqrt.pop %v971
    %v983 = vmul.f32 %v982, %v971
    %v984 = vmul.f32 %v983, %v982
    %v985 = vmul.f32 0.5, %v984
    %v986 = vsub.f32 1.5, %v985
    %v987 = vmul.f32 %v982, %v986
    %vm988 = vweird.f32 %v971
    %vm989 = vweird.f32 %v982
    %vm990 = vmor %vm988, %vm989
    %v991 = vsel %vm990, %v982, %v987
    %v992 = vmul.f32 %v958, %v981
    %v993 = vmul.f32 %v959, %v991
    %v995 = vperm.slane %v948, 0
    %v997 = vmul.f32 %v992, %v995
    %v998 = vmul.f32 %v993, %v995
    %v1000 = vperm.slane %v949, 0
    %v1002 = vadd.f32 %v997, %v1000
    %v1003 = vadd.f32 %v998, %v1000
    %v1004 = vpack.c.bf16 %v1003, %v1002
    %v1005 = vld [vmem:[%s13] sm:$0xf]
    %v1006 = vld [vmem:[%s13 + $0x4] sm:$0xf]
    %v1007 = vld [vmem:[%s13 + $0x8] sm:$0xf]
    %v1008 = vld [vmem:[%s13 + $0xc] sm:$0xf]
    %v1009 = vld [vmem:[%s14] sm:$0x1]
    %v1011 = vperm.slane %v1009, 0
    %v1017 = vunpack.c.l.b16 %v1005
    %v1018 = vunpack.c.l.b16 %v1006
    %v1019 = vunpack.c.l.b16 %v1007
    %v1020 = vunpack.c.l.b16 %v1008
    %v1021 = vpack.c.b16 %v1018, %v1017
    %v1022 = vpack.c.b16 %v1020, %v1019
    %v1026 = vsel %vm100, %v1004, 0
    %1028 = vmatpush.bf16.msra.mxu0 0
    %1029 = vmatpush.bf16.msra.mxu0 0
    %1030 = vmatpush.bf16.msra.mxu0 0
    %1031 = vmatpush.bf16.msra.mxu0 0
    %1032 = vmatpush.bf16.msra.mxu0 0
    %1033 = vmatpush.bf16.msra.mxu0 0
    %1034 = vmatpush.bf16.msra.mxu0 %v1022
    %1035 = vmatpush.bf16.msra.mxu0 %v1021
    %1036 = vmatmul.bf16.gmra.mxu0 %v1026
    %v1037 = vpop.f32.mrf.mxu0
    %v1038 = vadd.f32 %v1011, %v1037
    %v1039 = vpop.f32.mrf.mxu0
    %v1040 = vadd.f32 %v1011, %v1039
    %1041 = vdwg.mxu0
    %1042 = vst [vmem:[#allocation5] sm:$0xff] %v1038
    %1043 = vst [vmem:[#allocation5 + $0x8] sm:$0xff] %v1040
    %v1044 = vmul.f32 %v1002, 0.5
    %v1045 = vmul.f32 %v1003, 0.5
    %v1046 = vmul.f32 %v1002, 0.044715
    %v1047 = vmul.f32 %v1003, 0.044715
    %v1048 = vmul.f32 %v1046, %v1002
    %v1049 = vmul.f32 %v1047, %v1003
    %v1050 = vmul.f32 %v1048, %v1002
    %v1051 = vmul.f32 %v1049, %v1003
    %v1052 = vadd.f32 %v1002, %v1050
    %v1053 = vadd.f32 %v1003, %v1051
    %v1054 = vmul.f32 %v1052, 0.7978846
    %v1055 = vmul.f32 %v1053, 0.7978846
    %v1056 = vtanh.pop %v1054
    %v1057 = vtanh.pop %v1055
    %v1058 = vadd.f32 %v1056, 1.0
    %v1059 = vadd.f32 %v1057, 1.0
    %v1060 = vmul.f32 %v1044, %v1058
    %v1061 = vmul.f32 %v1045, %v1059
    %v1062 = vpack.c.bf16 %v1061, %v1060
    %v1063 = vld [vmem:[#allocation2] sm:$0xf]
    %v1064 = vld [vmem:[#allocation2 + $0x4] sm:$0xf]
    %v1065 = vld [vmem:[#allocation2 + $0x8] sm:$0xf]
    %v1066 = vld [vmem:[#allocation2 + $0xc] sm:$0xf]
    %v1067 = vld [vmem:[%s16] sm:$0x1]
    %v1069 = vperm.slane %v1067, 0
    %v1075 = vunpack.c.l.b16 %v1063
    %v1076 = vunpack.c.l.b16 %v1064
    %v1077 = vunpack.c.l.b16 %v1065
    %v1078 = vunpack.c.l.b16 %v1066
    %v1079 = vpack.c.b16 %v1076, %v1075
    %v1080 = vpack.c.b16 %v1078, %v1077
    %v1084 = vsel %vm100, %v1062, 0
    %1086 = vmatpush.bf16.msra.mxu0 0
    %1087 = vmatpush.bf16.msra.mxu0 0
    %1088 = vmatpush.bf16.msra.mxu0 0
    %1089 = vmatpush.bf16.msra.mxu0 0
    %1090 = vmatpush.bf16.msra.mxu0 0
    %1091 = vmatpush.bf16.msra.mxu0 0
    %1092 = vmatpush.bf16.msra.mxu0 %v1080
    %1093 = vmatpush.bf16.msra.mxu0 %v1079
    %1094 = vmatmul.bf16.gmra.mxu0 %v1084
    %v1095 = vpop.f32.mrf.mxu0
    %v1096 = vadd.f32 %v1069, %v1095
    %v1097 = vpop.f32.mrf.mxu0
    %v1098 = vadd.f32 %v1069, %v1097
    %1099 = vdwg.mxu0
    %1100 = vst [vmem:[#allocation6] sm:$0xff] %v1096
    %1101 = vst [vmem:[#allocation6 + $0x8] sm:$0xff] %v1098
    // Predicated region
    $region74: #{tpu_custom_call.1} parent=1 // pred_check
      _
    $region75: #{tpu_custom_call.1} parent=1 // pred_check_branch
      %1103 = sbr.rel (0) target = $region77
    $region76: #{tpu_custom_call.1} parent=1 // pred_region
      %1105 = vsyncadd [#allocation4], 0
      %s1106 = sshll.u32 [#allocation5], 4
      %s1107 = int_to_ptr.vmem [resolvable:$true] %s1106
      %s1108 = sshll.u32 %s17, 4
      %s1109 = int_to_ptr.hbm [resolvable:$true] %s1108
      %1114 = dma.vmem_to_hbm [thread:$0]  %s1107, 256, %s1109, [#allocation4], 128, 128, 8
    $region77: #{tpu_custom_call.1} parent=1 // pred_fallthru
      _
    // Predicated region
    $region78: #{tpu_custom_call.1} parent=1 // pred_check
      _
    $region79: #{tpu_custom_call.1} parent=1 // pred_check_branch
      %1116 = sbr.rel (0) target = $region81
    $region80: #{tpu_custom_call.1} parent=1 // pred_region
      %1118 = vsyncadd [#allocation7], 0
      %s1119 = sshll.u32 [#allocation6], 4
      %s1120 = int_to_ptr.vmem [resolvable:$true] %s1119
      %s1121 = sshll.u32 %s18, 4
      %s1122 = int_to_ptr.hbm [resolvable:$true] %s1121
      %1127 = dma.vmem_to_hbm [thread:$0]  %s1120, 256, %s1122, [#allocation7], 128, 128, 8
    $region81: #{tpu_custom_call.1} parent=1 // pred_fallthru
      _
    // Predicated region
    $region82: #{tpu_custom_call.1} parent=1 // pred_check
      _
    $region83: #{tpu_custom_call.1} parent=1 // pred_check_branch
      %1129 = sbr.rel (0) target = $region85
    $region84: #{tpu_custom_call.1} parent=1 // pred_region
      %1131 = dma.done [#allocation4], 256
    $region85: #{tpu_custom_call.1} parent=1 // pred_fallthru
      _
    // Predicated region
    $region86: #{tpu_custom_call.1} parent=1 // pred_check
      _
    $region87: #{tpu_custom_call.1} parent=1 // pred_check_branch
      %1133 = sbr.rel (0) target = $region89
    $region88: #{tpu_custom_call.1} parent=1 // pred_region
      %1135 = dma.done [#allocation7], 256
    $region89: #{tpu_custom_call.1} parent=1 // pred_fallthru
      _
    %1136 = vsyncpa [#allocation3], 1
    %1137 = vsyncpa [#allocation4], 1
    %1138 = vsyncpa [#allocation7], 1

</llo_original>
